<compile_context>
chip_gen: v5e
topology: v5e:2x2
jax: 0.10.0
libtpu: 0.0.40
codegen_flags: <defaults>
</compile_context>

<pallas_src>
import functools

import jax
import jax.numpy as jnp
from jax.experimental import pallas as pl
from jax.experimental.pallas import tpu as pltpu

# ----- synthetic "config" (the original module reads these from a config dict) -----
VOLTAGE_DECAY = 0.2
BETA          = 1.0 - VOLTAGE_DECAY      # config['snn']['voltage_decay']
V_THRESH      = 1.0                      # config['snn']['threshold_voltage']
V_REST        = 0.0                      # config['snn']['resting_voltage']
THETA_PLUS    = 0.05                     # config['adaptive_threshold']['theta_plus']
THETA_DECAY   = 0.99                     # config['adaptive_threshold']['theta_decay']
TIME_STEPS    = 16                       # config['snn']['time_steps']

# Small shapes consistent with the module (module uses 6400 -> 1000 -> 4)
BATCH = 2
D_IN  = 256
HID   = 128
OUT   = 4

_SUBLANE = 8     # f32 sublane width
_LANE    = 128   # lane width


def _round_up(n, m):
    return ((n + m - 1) // m) * m


def _lif_step(cur, mem, theta, z):
    """StochasticAdaptiveLIF.forward with the Bernoulli draw in logit-threshold form.

    z = V_THRESH + logit(u), u ~ Uniform[0,1); spk = 1 iff u < sigmoid(mem - (V_THRESH+theta))
    which is exactly (mem - theta) > z.
    """
    mem = BETA * (mem - V_REST) + V_REST + cur
    spk_mask = (mem - theta) > z
    spk = spk_mask.astype(jnp.float32)
    # module does mem = mem * (1 - spk): reset spiked neurons to 0 (select form).
    mem = jnp.where(spk_mask, 0.0, mem)
    theta = THETA_DECAY * theta + THETA_PLUS * spk
    return spk, mem, theta


def _snn_kernel(x_ref, w1_ref, b1_ref, w2_ref, b2_ref, z1_ref, z2_ref, out_ref,
                *, time_steps):
    x  = x_ref[...]
    w1 = w1_ref[...]
    w2 = w2_ref[...]

    Bp = x.shape[0]
    Hp = w1.shape[1]
    Op = w2.shape[1]

    # Hoisted broadcasts (JAX does not CSE broadcast_in_dim -> do them once).
    b1_b = jnp.broadcast_to(b1_ref[...], (Bp, Hp))
    b2_b = jnp.broadcast_to(b2_ref[...], (Bp, Op))

    # cur1 = fc1(x) is identical every timestep (x is constant) -> hoist out of the loop.
    cur1 = jnp.dot(x, w1, preferred_element_type=jnp.float32) + b1_b

    mem1   = jnp.zeros((Bp, Hp), jnp.float32)
    theta1 = jnp.zeros((Bp, Hp), jnp.float32)
    mem2   = jnp.zeros((Bp, Op), jnp.float32)
    theta2 = jnp.zeros((Bp, Op), jnp.float32)
    out_spk = jnp.zeros((Bp, Op), jnp.float32)

    # Fully-unrolled static time loop (time_steps is a Python int).
    for t in range(time_steps):
        spk1, mem1, theta1 = _lif_step(cur1, mem1, theta1, z1_ref[t])
        cur2 = jnp.dot(spk1, w2, preferred_element_type=jnp.float32) + b2_b
        spk2, mem2, theta2 = _lif_step(cur2, mem2, theta2, z2_ref[t])
        out_spk = out_spk + spk2

    # Module divides by config['snn']['time_steps'] (== TIME_STEPS here).
    out_ref[...] = out_spk * jnp.float32(1.0 / TIME_STEPS)


def pad_params(w1, b1, w2, b2):
    """One-time padding of the weights to lane multiples (hoisted out of the call path)."""
    d_in, H = w1.shape
    O = w2.shape[1]
    Dp = _round_up(d_in, _LANE)
    Hp = _round_up(H, _LANE)
    Op = _round_up(O, _LANE)
    f32 = jnp.float32
    w1_p = jnp.zeros((Dp, Hp), f32).at[:d_in, :H].set(w1.astype(f32))
    b1_p = jnp.zeros((1, Hp),  f32).at[0, :H].set(b1.astype(f32))
    # NOTE: rows H:Hp of w2 MUST stay zero so spurious spikes in padded hidden lanes
    # never leak into the real outputs.
    w2_p = jnp.zeros((Hp, Op), f32).at[:H, :O].set(w2.astype(f32))
    b2_p = jnp.zeros((1, Op),  f32).at[0, :O].set(b2.astype(f32))
    return w1_p, b1_p, w2_p, b2_p


@functools.partial(jax.jit, static_argnames=("out_features", "time_steps"))
def adaptive_stochastic_snn(x, w1_p, b1_p, w2_p, b2_p, key, *,
                            out_features, time_steps=TIME_STEPS):
    B, d_in = x.shape
    Dp, Hp = w1_p.shape
    Op = w2_p.shape[1]
    Bp = _round_up(B, _SUBLANE)
    f32 = jnp.float32

    # Pad batch to sublane width so every vector op in the kernel is a full vreg op.
    x_p = jnp.zeros((Bp, Dp), f32).at[:B, :d_in].set(x.astype(f32))

    # One batched draw of all Bernoulli uniforms, converted to logit thresholds:
    #   spk = (mem - theta) > V_THRESH + logit(u)   <=>   u < sigmoid(mem - (V_THRESH+theta))
    # (removes all per-step sigmoids from the in-kernel recurrence).
    k1, k2 = jax.random.split(key)
    u1 = jax.random.uniform(k1, (time_steps, Bp, Hp), dtype=f32)
    u2 = jax.random.uniform(k2, (time_steps, Bp, Op), dtype=f32)
    z1 = V_THRESH + (jnp.log(u1) - jnp.log1p(-u1))
    z2 = V_THRESH + (jnp.log(u2) - jnp.log1p(-u2))

    kernel = functools.partial(_snn_kernel, time_steps=time_steps)
    vmem_spec = pl.BlockSpec(memory_space=pltpu.MemorySpace.VMEM)
    out_p = pl.pallas_call(
        kernel,
        out_shape=jax.ShapeDtypeStruct((Bp, Op), f32),
        # No grid: single invocation, every operand resident in VMEM once
        # (no pointless double-buffering of the constant weights / thresholds).
        in_specs=[vmem_spec] * 7,
        out_specs=vmem_spec,
    )(x_p, w1_p, b1_p, w2_p, b2_p, z1, z2)

    return out_p[:B, :out_features]


if __name__ == "__main__":
    key = jax.random.PRNGKey(0)
    kx, kw1, kb1, kw2, kb2, krun = jax.random.split(key, 6)

    # deterministic synthetic parameters (shapes mirror the module at reduced size)
    x  = jax.random.normal(kx,  (BATCH, D_IN), dtype=jnp.float32)
    w1 = jax.random.normal(kw1, (D_IN, HID),   dtype=jnp.float32) * 0.05
    b1 = jax.random.normal(kb1, (HID,),        dtype=jnp.float32) * 0.05
    w2 = jax.random.normal(kw2, (HID, OUT),    dtype=jnp.float32) * 0.05
    b2 = jax.random.normal(kb2, (OUT,),        dtype=jnp.float32) * 0.05

    # one-time init: pad the weights (kept out of the jitted per-call path)
    w1_p, b1_p, w2_p, b2_p = pad_params(w1, b1, w2, b2)

    out = adaptive_stochastic_snn(x, w1_p, b1_p, w2_p, b2_p, krun,
                                  out_features=OUT, time_steps=TIME_STEPS)
    out = jax.block_until_ready(out)

    assert out.shape == (BATCH, OUT)
    assert bool(jnp.all(jnp.isfinite(out)))
    # out_spk accumulates 0/1 spikes over TIME_STEPS steps then divides by TIME_STEPS
    assert bool(jnp.all(out >= 0.0)) and bool(jnp.all(out <= 1.0))
    print("KERNEL_OK")
</pallas_src>

<mosaic_0001>
module attributes {stable_mosaic.version = 11 : i64} {
  func.func @_snn_kernel(%arg0: memref<8x256xf32, #tpu.memory_space<vmem>>, %arg1: memref<256x128xf32, #tpu.memory_space<vmem>>, %arg2: memref<1x128xf32, #tpu.memory_space<vmem>>, %arg3: memref<128x128xf32, #tpu.memory_space<vmem>>, %arg4: memref<1x128xf32, #tpu.memory_space<vmem>>, %arg5: memref<16x8x128xf32, #tpu.memory_space<vmem>>, %arg6: memref<16x8x128xf32, #tpu.memory_space<vmem>>, %arg7: memref<8x128xf32, #tpu.memory_space<vmem>>) attributes {dimension_semantics = [], scalar_prefetch = 0 : i64, scratch_operands = 0 : i64, tpu.core_type = #tpu.core_type<tc>} {
    %c0 = arith.constant 0 : index
    %c0_0 = arith.constant 0 : index
    %0 = vector.load %arg0[%c0, %c0_0] : memref<8x256xf32, #tpu.memory_space<vmem>>, vector<8x256xf32>
    %c0_1 = arith.constant 0 : index
    %c0_2 = arith.constant 0 : index
    %1 = vector.load %arg1[%c0_1, %c0_2] : memref<256x128xf32, #tpu.memory_space<vmem>>, vector<256x128xf32>
    %c0_3 = arith.constant 0 : index
    %c0_4 = arith.constant 0 : index
    %2 = vector.load %arg3[%c0_3, %c0_4] : memref<128x128xf32, #tpu.memory_space<vmem>>, vector<128x128xf32>
    %c0_5 = arith.constant 0 : index
    %c0_6 = arith.constant 0 : index
    %3 = vector.load %arg2[%c0_5, %c0_6] : memref<1x128xf32, #tpu.memory_space<vmem>>, vector<1x128xf32>
    %4 = vector.shape_cast %3 : vector<1x128xf32> to vector<1x128xf32>
    %5 = vector.broadcast %4 : vector<1x128xf32> to vector<8x128xf32>
    %c0_7 = arith.constant 0 : index
    %c0_8 = arith.constant 0 : index
    %6 = vector.load %arg4[%c0_7, %c0_8] : memref<1x128xf32, #tpu.memory_space<vmem>>, vector<1x128xf32>
    %7 = vector.shape_cast %6 : vector<1x128xf32> to vector<1x128xf32>
    %8 = vector.broadcast %7 : vector<1x128xf32> to vector<8x128xf32>
    %cst = arith.constant dense<0.000000e+00> : vector<8x128xf32>
    %9 = tpu.matmul %0, %1, %cst {dimension_numbers = #tpu.dot_dimension_numbers<[1], [0], [0], [1], [0, 0, 1, 1], [], []>} : vector<8x256xf32>, vector<256x128xf32>, vector<8x128xf32> -> vector<8x128xf32>
    %10 = arith.addf %9, %5 : vector<8x128xf32>
    %cst_9 = arith.constant 0.000000e+00 : f32
    %11 = vector.broadcast %cst_9 : f32 to vector<8x128xf32>
    %cst_10 = arith.constant 0.000000e+00 : f32
    %12 = vector.broadcast %cst_10 : f32 to vector<8x128xf32>
    %cst_11 = arith.constant 0.000000e+00 : f32
    %13 = vector.broadcast %cst_11 : f32 to vector<8x128xf32>
    %cst_12 = arith.constant 0.000000e+00 : f32
    %14 = vector.broadcast %cst_12 : f32 to vector<8x128xf32>
    %cst_13 = arith.constant 0.000000e+00 : f32
    %15 = vector.broadcast %cst_13 : f32 to vector<8x128xf32>
    %c0_14 = arith.constant 0 : index
    %c0_15 = arith.constant 0 : index
    %c0_16 = arith.constant 0 : index
    %16 = vector.load %arg5[%c0_14, %c0_15, %c0_16] : memref<16x8x128xf32, #tpu.memory_space<vmem>>, vector<1x8x128xf32>
    %17 = vector.shape_cast %16 : vector<1x8x128xf32> to vector<8x128xf32>
    %cst_17 = arith.constant 0.000000e+00 : f32
    %18 = vector.broadcast %cst_17 : f32 to vector<8x128xf32>
    %19 = arith.subf %11, %18 : vector<8x128xf32>
    %cst_18 = arith.constant 8.000000e-01 : f32
    %20 = vector.broadcast %cst_18 : f32 to vector<8x128xf32>
    %21 = arith.mulf %20, %19 : vector<8x128xf32>
    %cst_19 = arith.constant 0.000000e+00 : f32
    %22 = vector.broadcast %cst_19 : f32 to vector<8x128xf32>
    %23 = arith.addf %21, %22 : vector<8x128xf32>
    %24 = arith.addf %23, %10 : vector<8x128xf32>
    %25 = arith.subf %24, %12 : vector<8x128xf32>
    %26 = arith.cmpf ogt, %25, %17 : vector<8x128xf32>
    %27 = arith.extui %26 : vector<8x128xi1> to vector<8x128xi32>
    %28 = arith.sitofp %27 : vector<8x128xi32> to vector<8x128xf32>
    %cst_20 = arith.constant 0.000000e+00 : f32
    %29 = vector.broadcast %cst_20 : f32 to vector<8x128xf32>
    %30 = arith.select %26, %29, %24 : vector<8x128xi1>, vector<8x128xf32>
    %cst_21 = arith.constant 9.900000e-01 : f32
    %31 = vector.broadcast %cst_21 : f32 to vector<8x128xf32>
    %32 = arith.mulf %31, %12 : vector<8x128xf32>
    %cst_22 = arith.constant 5.000000e-02 : f32
    %33 = vector.broadcast %cst_22 : f32 to vector<8x128xf32>
    %34 = arith.mulf %33, %28 : vector<8x128xf32>
    %35 = arith.addf %32, %34 : vector<8x128xf32>
    %cst_23 = arith.constant dense<0.000000e+00> : vector<8x128xf32>
    %36 = tpu.matmul %28, %2, %cst_23 {dimension_numbers = #tpu.dot_dimension_numbers<[1], [0], [0], [1], [0, 0, 1, 1], [], []>} : vector<8x128xf32>, vector<128x128xf32>, vector<8x128xf32> -> vector<8x128xf32>
    %37 = arith.addf %36, %8 : vector<8x128xf32>
    %c0_24 = arith.constant 0 : index
    %c0_25 = arith.constant 0 : index
    %c0_26 = arith.constant 0 : index
    %38 = vector.load %arg6[%c0_24, %c0_25, %c0_26] : memref<16x8x128xf32, #tpu.memory_space<vmem>>, vector<1x8x128xf32>
    %39 = vector.shape_cast %38 : vector<1x8x128xf32> to vector<8x128xf32>
    %cst_27 = arith.constant 0.000000e+00 : f32
    %40 = vector.broadcast %cst_27 : f32 to vector<8x128xf32>
    %41 = arith.subf %13, %40 : vector<8x128xf32>
    %cst_28 = arith.constant 8.000000e-01 : f32
    %42 = vector.broadcast %cst_28 : f32 to vector<8x128xf32>
    %43 = arith.mulf %42, %41 : vector<8x128xf32>
    %cst_29 = arith.constant 0.000000e+00 : f32
    %44 = vector.broadcast %cst_29 : f32 to vector<8x128xf32>
    %45 = arith.addf %43, %44 : vector<8x128xf32>
    %46 = arith.addf %45, %37 : vector<8x128xf32>
    %47 = arith.subf %46, %14 : vector<8x128xf32>
    %48 = arith.cmpf ogt, %47, %39 : vector<8x128xf32>
    %49 = arith.extui %48 : vector<8x128xi1> to vector<8x128xi32>
    %50 = arith.sitofp %49 : vector<8x128xi32> to vector<8x128xf32>
    %cst_30 = arith.constant 0.000000e+00 : f32
    %51 = vector.broadcast %cst_30 : f32 to vector<8x128xf32>
    %52 = arith.select %48, %51, %46 : vector<8x128xi1>, vector<8x128xf32>
    %cst_31 = arith.constant 9.900000e-01 : f32
    %53 = vector.broadcast %cst_31 : f32 to vector<8x128xf32>
    %54 = arith.mulf %53, %14 : vector<8x128xf32>
    %cst_32 = arith.constant 5.000000e-02 : f32
    %55 = vector.broadcast %cst_32 : f32 to vector<8x128xf32>
    %56 = arith.mulf %55, %50 : vector<8x128xf32>
    %57 = arith.addf %54, %56 : vector<8x128xf32>
    %58 = arith.addf %15, %50 : vector<8x128xf32>
    %c1 = arith.constant 1 : index
    %c0_33 = arith.constant 0 : index
    %c0_34 = arith.constant 0 : index
    %59 = vector.load %arg5[%c1, %c0_33, %c0_34] : memref<16x8x128xf32, #tpu.memory_space<vmem>>, vector<1x8x128xf32>
    %60 = vector.shape_cast %59 : vector<1x8x128xf32> to vector<8x128xf32>
    %cst_35 = arith.constant 0.000000e+00 : f32
    %61 = vector.broadcast %cst_35 : f32 to vector<8x128xf32>
    %62 = arith.subf %30, %61 : vector<8x128xf32>
    %cst_36 = arith.constant 8.000000e-01 : f32
    %63 = vector.broadcast %cst_36 : f32 to vector<8x128xf32>
    %64 = arith.mulf %63, %62 : vector<8x128xf32>
    %cst_37 = arith.constant 0.000000e+00 : f32
    %65 = vector.broadcast %cst_37 : f32 to vector<8x128xf32>
    %66 = arith.addf %64, %65 : vector<8x128xf32>
    %67 = arith.addf %66, %10 : vector<8x128xf32>
    %68 = arith.subf %67, %35 : vector<8x128xf32>
    %69 = arith.cmpf ogt, %68, %60 : vector<8x128xf32>
    %70 = arith.extui %69 : vector<8x128xi1> to vector<8x128xi32>
    %71 = arith.sitofp %70 : vector<8x128xi32> to vector<8x128xf32>
    %cst_38 = arith.constant 0.000000e+00 : f32
    %72 = vector.broadcast %cst_38 : f32 to vector<8x128xf32>
    %73 = arith.select %69, %72, %67 : vector<8x128xi1>, vector<8x128xf32>
    %cst_39 = arith.constant 9.900000e-01 : f32
    %74 = vector.broadcast %cst_39 : f32 to vector<8x128xf32>
    %75 = arith.mulf %74, %35 : vector<8x128xf32>
    %cst_40 = arith.constant 5.000000e-02 : f32
    %76 = vector.broadcast %cst_40 : f32 to vector<8x128xf32>
    %77 = arith.mulf %76, %71 : vector<8x128xf32>
    %78 = arith.addf %75, %77 : vector<8x128xf32>
    %cst_41 = arith.constant dense<0.000000e+00> : vector<8x128xf32>
    %79 = tpu.matmul %71, %2, %cst_41 {dimension_numbers = #tpu.dot_dimension_numbers<[1], [0], [0], [1], [0, 0, 1, 1], [], []>} : vector<8x128xf32>, vector<128x128xf32>, vector<8x128xf32> -> vector<8x128xf32>
    %80 = arith.addf %79, %8 : vector<8x128xf32>
    %c1_42 = arith.constant 1 : index
    %c0_43 = arith.constant 0 : index
    %c0_44 = arith.constant 0 : index
    %81 = vector.load %arg6[%c1_42, %c0_43, %c0_44] : memref<16x8x128xf32, #tpu.memory_space<vmem>>, vector<1x8x128xf32>
    %82 = vector.shape_cast %81 : vector<1x8x128xf32> to vector<8x128xf32>
    %cst_45 = arith.constant 0.000000e+00 : f32
    %83 = vector.broadcast %cst_45 : f32 to vector<8x128xf32>
    %84 = arith.subf %52, %83 : vector<8x128xf32>
    %cst_46 = arith.constant 8.000000e-01 : f32
    %85 = vector.broadcast %cst_46 : f32 to vector<8x128xf32>
    %86 = arith.mulf %85, %84 : vector<8x128xf32>
    %cst_47 = arith.constant 0.000000e+00 : f32
    %87 = vector.broadcast %cst_47 : f32 to vector<8x128xf32>
    %88 = arith.addf %86, %87 : vector<8x128xf32>
    %89 = arith.addf %88, %80 : vector<8x128xf32>
    %90 = arith.subf %89, %57 : vector<8x128xf32>
    %91 = arith.cmpf ogt, %90, %82 : vector<8x128xf32>
    %92 = arith.extui %91 : vector<8x128xi1> to vector<8x128xi32>
    %93 = arith.sitofp %92 : vector<8x128xi32> to vector<8x128xf32>
    %cst_48 = arith.constant 0.000000e+00 : f32
    %94 = vector.broadcast %cst_48 : f32 to vector<8x128xf32>
    %95 = arith.select %91, %94, %89 : vector<8x128xi1>, vector<8x128xf32>
    %cst_49 = arith.constant 9.900000e-01 : f32
    %96 = vector.broadcast %cst_49 : f32 to vector<8x128xf32>
    %97 = arith.mulf %96, %57 : vector<8x128xf32>
    %cst_50 = arith.constant 5.000000e-02 : f32
    %98 = vector.broadcast %cst_50 : f32 to vector<8x128xf32>
    %99 = arith.mulf %98, %93 : vector<8x128xf32>
    %100 = arith.addf %97, %99 : vector<8x128xf32>
    %101 = arith.addf %58, %93 : vector<8x128xf32>
    %c2 = arith.constant 2 : index
    %c0_51 = arith.constant 0 : index
    %c0_52 = arith.constant 0 : index
    %102 = vector.load %arg5[%c2, %c0_51, %c0_52] : memref<16x8x128xf32, #tpu.memory_space<vmem>>, vector<1x8x128xf32>
    %103 = vector.shape_cast %102 : vector<1x8x128xf32> to vector<8x128xf32>
    %cst_53 = arith.constant 0.000000e+00 : f32
    %104 = vector.broadcast %cst_53 : f32 to vector<8x128xf32>
    %105 = arith.subf %73, %104 : vector<8x128xf32>
    %cst_54 = arith.constant 8.000000e-01 : f32
    %106 = vector.broadcast %cst_54 : f32 to vector<8x128xf32>
    %107 = arith.mulf %106, %105 : vector<8x128xf32>
    %cst_55 = arith.constant 0.000000e+00 : f32
    %108 = vector.broadcast %cst_55 : f32 to vector<8x128xf32>
    %109 = arith.addf %107, %108 : vector<8x128xf32>
    %110 = arith.addf %109, %10 : vector<8x128xf32>
    %111 = arith.subf %110, %78 : vector<8x128xf32>
    %112 = arith.cmpf ogt, %111, %103 : vector<8x128xf32>
    %113 = arith.extui %112 : vector<8x128xi1> to vector<8x128xi32>
    %114 = arith.sitofp %113 : vector<8x128xi32> to vector<8x128xf32>
    %cst_56 = arith.constant 0.000000e+00 : f32
    %115 = vector.broadcast %cst_56 : f32 to vector<8x128xf32>
    %116 = arith.select %112, %115, %110 : vector<8x128xi1>, vector<8x128xf32>
    %cst_57 = arith.constant 9.900000e-01 : f32
    %117 = vector.broadcast %cst_57 : f32 to vector<8x128xf32>
    %118 = arith.mulf %117, %78 : vector<8x128xf32>
    %cst_58 = arith.constant 5.000000e-02 : f32
    %119 = vector.broadcast %cst_58 : f32 to vector<8x128xf32>
    %120 = arith.mulf %119, %114 : vector<8x128xf32>
    %121 = arith.addf %118, %120 : vector<8x128xf32>
    %cst_59 = arith.constant dense<0.000000e+00> : vector<8x128xf32>
    %122 = tpu.matmul %114, %2, %cst_59 {dimension_numbers = #tpu.dot_dimension_numbers<[1], [0], [0], [1], [0, 0, 1, 1], [], []>} : vector<8x128xf32>, vector<128x128xf32>, vector<8x128xf32> -> vector<8x128xf32>
    %123 = arith.addf %122, %8 : vector<8x128xf32>
    %c2_60 = arith.constant 2 : index
    %c0_61 = arith.constant 0 : index
    %c0_62 = arith.constant 0 : index
    %124 = vector.load %arg6[%c2_60, %c0_61, %c0_62] : memref<16x8x128xf32, #tpu.memory_space<vmem>>, vector<1x8x128xf32>
    %125 = vector.shape_cast %124 : vector<1x8x128xf32> to vector<8x128xf32>
    %cst_63 = arith.constant 0.000000e+00 : f32
    %126 = vector.broadcast %cst_63 : f32 to vector<8x128xf32>
    %127 = arith.subf %95, %126 : vector<8x128xf32>
    %cst_64 = arith.constant 8.000000e-01 : f32
    %128 = vector.broadcast %cst_64 : f32 to vector<8x128xf32>
    %129 = arith.mulf %128, %127 : vector<8x128xf32>
    %cst_65 = arith.constant 0.000000e+00 : f32
    %130 = vector.broadcast %cst_65 : f32 to vector<8x128xf32>
    %131 = arith.addf %129, %130 : vector<8x128xf32>
    %132 = arith.addf %131, %123 : vector<8x128xf32>
    %133 = arith.subf %132, %100 : vector<8x128xf32>
    %134 = arith.cmpf ogt, %133, %125 : vector<8x128xf32>
    %135 = arith.extui %134 : vector<8x128xi1> to vector<8x128xi32>
    %136 = arith.sitofp %135 : vector<8x128xi32> to vector<8x128xf32>
    %cst_66 = arith.constant 0.000000e+00 : f32
    %137 = vector.broadcast %cst_66 : f32 to vector<8x128xf32>
    %138 = arith.select %134, %137, %132 : vector<8x128xi1>, vector<8x128xf32>
    %cst_67 = arith.constant 9.900000e-01 : f32
    %139 = vector.broadcast %cst_67 : f32 to vector<8x128xf32>
    %140 = arith.mulf %139, %100 : vector<8x128xf32>
    %cst_68 = arith.constant 5.000000e-02 : f32
    %141 = vector.broadcast %cst_68 : f32 to vector<8x128xf32>
    %142 = arith.mulf %141, %136 : vector<8x128xf32>
    %143 = arith.addf %140, %142 : vector<8x128xf32>
    %144 = arith.addf %101, %136 : vector<8x128xf32>
    %c3 = arith.constant 3 : index
    %c0_69 = arith.constant 0 : index
    %c0_70 = arith.constant 0 : index
    %145 = vector.load %arg5[%c3, %c0_69, %c0_70] : memref<16x8x128xf32, #tpu.memory_space<vmem>>, vector<1x8x128xf32>
    %146 = vector.shape_cast %145 : vector<1x8x128xf32> to vector<8x128xf32>
    %cst_71 = arith.constant 0.000000e+00 : f32
    %147 = vector.broadcast %cst_71 : f32 to vector<8x128xf32>
    %148 = arith.subf %116, %147 : vector<8x128xf32>
    %cst_72 = arith.constant 8.000000e-01 : f32
    %149 = vector.broadcast %cst_72 : f32 to vector<8x128xf32>
    %150 = arith.mulf %149, %148 : vector<8x128xf32>
    %cst_73 = arith.constant 0.000000e+00 : f32
    %151 = vector.broadcast %cst_73 : f32 to vector<8x128xf32>
    %152 = arith.addf %150, %151 : vector<8x128xf32>
    %153 = arith.addf %152, %10 : vector<8x128xf32>
    %154 = arith.subf %153, %121 : vector<8x128xf32>
    %155 = arith.cmpf ogt, %154, %146 : vector<8x128xf32>
    %156 = arith.extui %155 : vector<8x128xi1> to vector<8x128xi32>
    %157 = arith.sitofp %156 : vector<8x128xi32> to vector<8x128xf32>
    %cst_74 = arith.constant 0.000000e+00 : f32
    %158 = vector.broadcast %cst_74 : f32 to vector<8x128xf32>
    %159 = arith.select %155, %158, %153 : vector<8x128xi1>, vector<8x128xf32>
    %cst_75 = arith.constant 9.900000e-01 : f32
    %160 = vector.broadcast %cst_75 : f32 to vector<8x128xf32>
    %161 = arith.mulf %160, %121 : vector<8x128xf32>
    %cst_76 = arith.constant 5.000000e-02 : f32
    %162 = vector.broadcast %cst_76 : f32 to vector<8x128xf32>
    %163 = arith.mulf %162, %157 : vector<8x128xf32>
    %164 = arith.addf %161, %163 : vector<8x128xf32>
    %cst_77 = arith.constant dense<0.000000e+00> : vector<8x128xf32>
    %165 = tpu.matmul %157, %2, %cst_77 {dimension_numbers = #tpu.dot_dimension_numbers<[1], [0], [0], [1], [0, 0, 1, 1], [], []>} : vector<8x128xf32>, vector<128x128xf32>, vector<8x128xf32> -> vector<8x128xf32>
    %166 = arith.addf %165, %8 : vector<8x128xf32>
    %c3_78 = arith.constant 3 : index
    %c0_79 = arith.constant 0 : index
    %c0_80 = arith.constant 0 : index
    %167 = vector.load %arg6[%c3_78, %c0_79, %c0_80] : memref<16x8x128xf32, #tpu.memory_space<vmem>>, vector<1x8x128xf32>
    %168 = vector.shape_cast %167 : vector<1x8x128xf32> to vector<8x128xf32>
    %cst_81 = arith.constant 0.000000e+00 : f32
    %169 = vector.broadcast %cst_81 : f32 to vector<8x128xf32>
    %170 = arith.subf %138, %169 : vector<8x128xf32>
    %cst_82 = arith.constant 8.000000e-01 : f32
    %171 = vector.broadcast %cst_82 : f32 to vector<8x128xf32>
    %172 = arith.mulf %171, %170 : vector<8x128xf32>
    %cst_83 = arith.constant 0.000000e+00 : f32
    %173 = vector.broadcast %cst_83 : f32 to vector<8x128xf32>
    %174 = arith.addf %172, %173 : vector<8x128xf32>
    %175 = arith.addf %174, %166 : vector<8x128xf32>
    %176 = arith.subf %175, %143 : vector<8x128xf32>
    %177 = arith.cmpf ogt, %176, %168 : vector<8x128xf32>
    %178 = arith.extui %177 : vector<8x128xi1> to vector<8x128xi32>
    %179 = arith.sitofp %178 : vector<8x128xi32> to vector<8x128xf32>
    %cst_84 = arith.constant 0.000000e+00 : f32
    %180 = vector.broadcast %cst_84 : f32 to vector<8x128xf32>
    %181 = arith.select %177, %180, %175 : vector<8x128xi1>, vector<8x128xf32>
    %cst_85 = arith.constant 9.900000e-01 : f32
    %182 = vector.broadcast %cst_85 : f32 to vector<8x128xf32>
    %183 = arith.mulf %182, %143 : vector<8x128xf32>
    %cst_86 = arith.constant 5.000000e-02 : f32
    %184 = vector.broadcast %cst_86 : f32 to vector<8x128xf32>
    %185 = arith.mulf %184, %179 : vector<8x128xf32>
    %186 = arith.addf %183, %185 : vector<8x128xf32>
    %187 = arith.addf %144, %179 : vector<8x128xf32>
    %c4 = arith.constant 4 : index
    %c0_87 = arith.constant 0 : index
    %c0_88 = arith.constant 0 : index
    %188 = vector.load %arg5[%c4, %c0_87, %c0_88] : memref<16x8x128xf32, #tpu.memory_space<vmem>>, vector<1x8x128xf32>
    %189 = vector.shape_cast %188 : vector<1x8x128xf32> to vector<8x128xf32>
    %cst_89 = arith.constant 0.000000e+00 : f32
    %190 = vector.broadcast %cst_89 : f32 to vector<8x128xf32>
    %191 = arith.subf %159, %190 : vector<8x128xf32>
    %cst_90 = arith.constant 8.000000e-01 : f32
    %192 = vector.broadcast %cst_90 : f32 to vector<8x128xf32>
    %193 = arith.mulf %192, %191 : vector<8x128xf32>
    %cst_91 = arith.constant 0.000000e+00 : f32
    %194 = vector.broadcast %cst_91 : f32 to vector<8x128xf32>
    %195 = arith.addf %193, %194 : vector<8x128xf32>
    %196 = arith.addf %195, %10 : vector<8x128xf32>
    %197 = arith.subf %196, %164 : vector<8x128xf32>
    %198 = arith.cmpf ogt, %197, %189 : vector<8x128xf32>
    %199 = arith.extui %198 : vector<8x128xi1> to vector<8x128xi32>
    %200 = arith.sitofp %199 : vector<8x128xi32> to vector<8x128xf32>
    %cst_92 = arith.constant 0.000000e+00 : f32
    %201 = vector.broadcast %cst_92 : f32 to vector<8x128xf32>
    %202 = arith.select %198, %201, %196 : vector<8x128xi1>, vector<8x128xf32>
    %cst_93 = arith.constant 9.900000e-01 : f32
    %203 = vector.broadcast %cst_93 : f32 to vector<8x128xf32>
    %204 = arith.mulf %203, %164 : vector<8x128xf32>
    %cst_94 = arith.constant 5.000000e-02 : f32
    %205 = vector.broadcast %cst_94 : f32 to vector<8x128xf32>
    %206 = arith.mulf %205, %200 : vector<8x128xf32>
    %207 = arith.addf %204, %206 : vector<8x128xf32>
    %cst_95 = arith.constant dense<0.000000e+00> : vector<8x128xf32>
    %208 = tpu.matmul %200, %2, %cst_95 {dimension_numbers = #tpu.dot_dimension_numbers<[1], [0], [0], [1], [0, 0, 1, 1], [], []>} : vector<8x128xf32>, vector<128x128xf32>, vector<8x128xf32> -> vector<8x128xf32>
    %209 = arith.addf %208, %8 : vector<8x128xf32>
    %c4_96 = arith.constant 4 : index
    %c0_97 = arith.constant 0 : index
    %c0_98 = arith.constant 0 : index
    %210 = vector.load %arg6[%c4_96, %c0_97, %c0_98] : memref<16x8x128xf32, #tpu.memory_space<vmem>>, vector<1x8x128xf32>
    %211 = vector.shape_cast %210 : vector<1x8x128xf32> to vector<8x128xf32>
    %cst_99 = arith.constant 0.000000e+00 : f32
    %212 = vector.broadcast %cst_99 : f32 to vector<8x128xf32>
    %213 = arith.subf %181, %212 : vector<8x128xf32>
    %cst_100 = arith.constant 8.000000e-01 : f32
    %214 = vector.broadcast %cst_100 : f32 to vector<8x128xf32>
    %215 = arith.mulf %214, %213 : vector<8x128xf32>
    %cst_101 = arith.constant 0.000000e+00 : f32
    %216 = vector.broadcast %cst_101 : f32 to vector<8x128xf32>
    %217 = arith.addf %215, %216 : vector<8x128xf32>
    %218 = arith.addf %217, %209 : vector<8x128xf32>
    %219 = arith.subf %218, %186 : vector<8x128xf32>
    %220 = arith.cmpf ogt, %219, %211 : vector<8x128xf32>
    %221 = arith.extui %220 : vector<8x128xi1> to vector<8x128xi32>
    %222 = arith.sitofp %221 : vector<8x128xi32> to vector<8x128xf32>
    %cst_102 = arith.constant 0.000000e+00 : f32
    %223 = vector.broadcast %cst_102 : f32 to vector<8x128xf32>
    %224 = arith.select %220, %223, %218 : vector<8x128xi1>, vector<8x128xf32>
    %cst_103 = arith.constant 9.900000e-01 : f32
    %225 = vector.broadcast %cst_103 : f32 to vector<8x128xf32>
    %226 = arith.mulf %225, %186 : vector<8x128xf32>
    %cst_104 = arith.constant 5.000000e-02 : f32
    %227 = vector.broadcast %cst_104 : f32 to vector<8x128xf32>
    %228 = arith.mulf %227, %222 : vector<8x128xf32>
    %229 = arith.addf %226, %228 : vector<8x128xf32>
    %230 = arith.addf %187, %222 : vector<8x128xf32>
    %c5 = arith.constant 5 : index
    %c0_105 = arith.constant 0 : index
    %c0_106 = arith.constant 0 : index
    %231 = vector.load %arg5[%c5, %c0_105, %c0_106] : memref<16x8x128xf32, #tpu.memory_space<vmem>>, vector<1x8x128xf32>
    %232 = vector.shape_cast %231 : vector<1x8x128xf32> to vector<8x128xf32>
    %cst_107 = arith.constant 0.000000e+00 : f32
    %233 = vector.broadcast %cst_107 : f32 to vector<8x128xf32>
    %234 = arith.subf %202, %233 : vector<8x128xf32>
    %cst_108 = arith.constant 8.000000e-01 : f32
    %235 = vector.broadcast %cst_108 : f32 to vector<8x128xf32>
    %236 = arith.mulf %235, %234 : vector<8x128xf32>
    %cst_109 = arith.constant 0.000000e+00 : f32
    %237 = vector.broadcast %cst_109 : f32 to vector<8x128xf32>
    %238 = arith.addf %236, %237 : vector<8x128xf32>
    %239 = arith.addf %238, %10 : vector<8x128xf32>
    %240 = arith.subf %239, %207 : vector<8x128xf32>
    %241 = arith.cmpf ogt, %240, %232 : vector<8x128xf32>
    %242 = arith.extui %241 : vector<8x128xi1> to vector<8x128xi32>
    %243 = arith.sitofp %242 : vector<8x128xi32> to vector<8x128xf32>
    %cst_110 = arith.constant 0.000000e+00 : f32
    %244 = vector.broadcast %cst_110 : f32 to vector<8x128xf32>
    %245 = arith.select %241, %244, %239 : vector<8x128xi1>, vector<8x128xf32>
    %cst_111 = arith.constant 9.900000e-01 : f32
    %246 = vector.broadcast %cst_111 : f32 to vector<8x128xf32>
    %247 = arith.mulf %246, %207 : vector<8x128xf32>
    %cst_112 = arith.constant 5.000000e-02 : f32
    %248 = vector.broadcast %cst_112 : f32 to vector<8x128xf32>
    %249 = arith.mulf %248, %243 : vector<8x128xf32>
    %250 = arith.addf %247, %249 : vector<8x128xf32>
    %cst_113 = arith.constant dense<0.000000e+00> : vector<8x128xf32>
    %251 = tpu.matmul %243, %2, %cst_113 {dimension_numbers = #tpu.dot_dimension_numbers<[1], [0], [0], [1], [0, 0, 1, 1], [], []>} : vector<8x128xf32>, vector<128x128xf32>, vector<8x128xf32> -> vector<8x128xf32>
    %252 = arith.addf %251, %8 : vector<8x128xf32>
    %c5_114 = arith.constant 5 : index
    %c0_115 = arith.constant 0 : index
    %c0_116 = arith.constant 0 : index
    %253 = vector.load %arg6[%c5_114, %c0_115, %c0_116] : memref<16x8x128xf32, #tpu.memory_space<vmem>>, vector<1x8x128xf32>
    %254 = vector.shape_cast %253 : vector<1x8x128xf32> to vector<8x128xf32>
    %cst_117 = arith.constant 0.000000e+00 : f32
    %255 = vector.broadcast %cst_117 : f32 to vector<8x128xf32>
    %256 = arith.subf %224, %255 : vector<8x128xf32>
    %cst_118 = arith.constant 8.000000e-01 : f32
    %257 = vector.broadcast %cst_118 : f32 to vector<8x128xf32>
    %258 = arith.mulf %257, %256 : vector<8x128xf32>
    %cst_119 = arith.constant 0.000000e+00 : f32
    %259 = vector.broadcast %cst_119 : f32 to vector<8x128xf32>
    %260 = arith.addf %258, %259 : vector<8x128xf32>
    %261 = arith.addf %260, %252 : vector<8x128xf32>
    %262 = arith.subf %261, %229 : vector<8x128xf32>
    %263 = arith.cmpf ogt, %262, %254 : vector<8x128xf32>
    %264 = arith.extui %263 : vector<8x128xi1> to vector<8x128xi32>
    %265 = arith.sitofp %264 : vector<8x128xi32> to vector<8x128xf32>
    %cst_120 = arith.constant 0.000000e+00 : f32
    %266 = vector.broadcast %cst_120 : f32 to vector<8x128xf32>
    %267 = arith.select %263, %266, %261 : vector<8x128xi1>, vector<8x128xf32>
    %cst_121 = arith.constant 9.900000e-01 : f32
    %268 = vector.broadcast %cst_121 : f32 to vector<8x128xf32>
    %269 = arith.mulf %268, %229 : vector<8x128xf32>
    %cst_122 = arith.constant 5.000000e-02 : f32
    %270 = vector.broadcast %cst_122 : f32 to vector<8x128xf32>
    %271 = arith.mulf %270, %265 : vector<8x128xf32>
    %272 = arith.addf %269, %271 : vector<8x128xf32>
    %273 = arith.addf %230, %265 : vector<8x128xf32>
    %c6 = arith.constant 6 : index
    %c0_123 = arith.constant 0 : index
    %c0_124 = arith.constant 0 : index
    %274 = vector.load %arg5[%c6, %c0_123, %c0_124] : memref<16x8x128xf32, #tpu.memory_space<vmem>>, vector<1x8x128xf32>
    %275 = vector.shape_cast %274 : vector<1x8x128xf32> to vector<8x128xf32>
    %cst_125 = arith.constant 0.000000e+00 : f32
    %276 = vector.broadcast %cst_125 : f32 to vector<8x128xf32>
    %277 = arith.subf %245, %276 : vector<8x128xf32>
    %cst_126 = arith.constant 8.000000e-01 : f32
    %278 = vector.broadcast %cst_126 : f32 to vector<8x128xf32>
    %279 = arith.mulf %278, %277 : vector<8x128xf32>
    %cst_127 = arith.constant 0.000000e+00 : f32
    %280 = vector.broadcast %cst_127 : f32 to vector<8x128xf32>
    %281 = arith.addf %279, %280 : vector<8x128xf32>
    %282 = arith.addf %281, %10 : vector<8x128xf32>
    %283 = arith.subf %282, %250 : vector<8x128xf32>
    %284 = arith.cmpf ogt, %283, %275 : vector<8x128xf32>
    %285 = arith.extui %284 : vector<8x128xi1> to vector<8x128xi32>
    %286 = arith.sitofp %285 : vector<8x128xi32> to vector<8x128xf32>
    %cst_128 = arith.constant 0.000000e+00 : f32
    %287 = vector.broadcast %cst_128 : f32 to vector<8x128xf32>
    %288 = arith.select %284, %287, %282 : vector<8x128xi1>, vector<8x128xf32>
    %cst_129 = arith.constant 9.900000e-01 : f32
    %289 = vector.broadcast %cst_129 : f32 to vector<8x128xf32>
    %290 = arith.mulf %289, %250 : vector<8x128xf32>
    %cst_130 = arith.constant 5.000000e-02 : f32
    %291 = vector.broadcast %cst_130 : f32 to vector<8x128xf32>
    %292 = arith.mulf %291, %286 : vector<8x128xf32>
    %293 = arith.addf %290, %292 : vector<8x128xf32>
    %cst_131 = arith.constant dense<0.000000e+00> : vector<8x128xf32>
    %294 = tpu.matmul %286, %2, %cst_131 {dimension_numbers = #tpu.dot_dimension_numbers<[1], [0], [0], [1], [0, 0, 1, 1], [], []>} : vector<8x128xf32>, vector<128x128xf32>, vector<8x128xf32> -> vector<8x128xf32>
    %295 = arith.addf %294, %8 : vector<8x128xf32>
    %c6_132 = arith.constant 6 : index
    %c0_133 = arith.constant 0 : index
    %c0_134 = arith.constant 0 : index
    %296 = vector.load %arg6[%c6_132, %c0_133, %c0_134] : memref<16x8x128xf32, #tpu.memory_space<vmem>>, vector<1x8x128xf32>
    %297 = vector.shape_cast %296 : vector<1x8x128xf32> to vector<8x128xf32>
    %cst_135 = arith.constant 0.000000e+00 : f32
    %298 = vector.broadcast %cst_135 : f32 to vector<8x128xf32>
    %299 = arith.subf %267, %298 : vector<8x128xf32>
    %cst_136 = arith.constant 8.000000e-01 : f32
    %300 = vector.broadcast %cst_136 : f32 to vector<8x128xf32>
    %301 = arith.mulf %300, %299 : vector<8x128xf32>
    %cst_137 = arith.constant 0.000000e+00 : f32
    %302 = vector.broadcast %cst_137 : f32 to vector<8x128xf32>
    %303 = arith.addf %301, %302 : vector<8x128xf32>
    %304 = arith.addf %303, %295 : vector<8x128xf32>
    %305 = arith.subf %304, %272 : vector<8x128xf32>
    %306 = arith.cmpf ogt, %305, %297 : vector<8x128xf32>
    %307 = arith.extui %306 : vector<8x128xi1> to vector<8x128xi32>
    %308 = arith.sitofp %307 : vector<8x128xi32> to vector<8x128xf32>
    %cst_138 = arith.constant 0.000000e+00 : f32
    %309 = vector.broadcast %cst_138 : f32 to vector<8x128xf32>
    %310 = arith.select %306, %309, %304 : vector<8x128xi1>, vector<8x128xf32>
    %cst_139 = arith.constant 9.900000e-01 : f32
    %311 = vector.broadcast %cst_139 : f32 to vector<8x128xf32>
    %312 = arith.mulf %311, %272 : vector<8x128xf32>
    %cst_140 = arith.constant 5.000000e-02 : f32
    %313 = vector.broadcast %cst_140 : f32 to vector<8x128xf32>
    %314 = arith.mulf %313, %308 : vector<8x128xf32>
    %315 = arith.addf %312, %314 : vector<8x128xf32>
    %316 = arith.addf %273, %308 : vector<8x128xf32>
    %c7 = arith.constant 7 : index
    %c0_141 = arith.constant 0 : index
    %c0_142 = arith.constant 0 : index
    %317 = vector.load %arg5[%c7, %c0_141, %c0_142] : memref<16x8x128xf32, #tpu.memory_space<vmem>>, vector<1x8x128xf32>
    %318 = vector.shape_cast %317 : vector<1x8x128xf32> to vector<8x128xf32>
    %cst_143 = arith.constant 0.000000e+00 : f32
    %319 = vector.broadcast %cst_143 : f32 to vector<8x128xf32>
    %320 = arith.subf %288, %319 : vector<8x128xf32>
    %cst_144 = arith.constant 8.000000e-01 : f32
    %321 = vector.broadcast %cst_144 : f32 to vector<8x128xf32>
    %322 = arith.mulf %321, %320 : vector<8x128xf32>
    %cst_145 = arith.constant 0.000000e+00 : f32
    %323 = vector.broadcast %cst_145 : f32 to vector<8x128xf32>
    %324 = arith.addf %322, %323 : vector<8x128xf32>
    %325 = arith.addf %324, %10 : vector<8x128xf32>
    %326 = arith.subf %325, %293 : vector<8x128xf32>
    %327 = arith.cmpf ogt, %326, %318 : vector<8x128xf32>
    %328 = arith.extui %327 : vector<8x128xi1> to vector<8x128xi32>
    %329 = arith.sitofp %328 : vector<8x128xi32> to vector<8x128xf32>
    %cst_146 = arith.constant 0.000000e+00 : f32
    %330 = vector.broadcast %cst_146 : f32 to vector<8x128xf32>
    %331 = arith.select %327, %330, %325 : vector<8x128xi1>, vector<8x128xf32>
    %cst_147 = arith.constant 9.900000e-01 : f32
    %332 = vector.broadcast %cst_147 : f32 to vector<8x128xf32>
    %333 = arith.mulf %332, %293 : vector<8x128xf32>
    %cst_148 = arith.constant 5.000000e-02 : f32
    %334 = vector.broadcast %cst_148 : f32 to vector<8x128xf32>
    %335 = arith.mulf %334, %329 : vector<8x128xf32>
    %336 = arith.addf %333, %335 : vector<8x128xf32>
    %cst_149 = arith.constant dense<0.000000e+00> : vector<8x128xf32>
    %337 = tpu.matmul %329, %2, %cst_149 {dimension_numbers = #tpu.dot_dimension_numbers<[1], [0], [0], [1], [0, 0, 1, 1], [], []>} : vector<8x128xf32>, vector<128x128xf32>, vector<8x128xf32> -> vector<8x128xf32>
    %338 = arith.addf %337, %8 : vector<8x128xf32>
    %c7_150 = arith.constant 7 : index
    %c0_151 = arith.constant 0 : index
    %c0_152 = arith.constant 0 : index
    %339 = vector.load %arg6[%c7_150, %c0_151, %c0_152] : memref<16x8x128xf32, #tpu.memory_space<vmem>>, vector<1x8x128xf32>
    %340 = vector.shape_cast %339 : vector<1x8x128xf32> to vector<8x128xf32>
    %cst_153 = arith.constant 0.000000e+00 : f32
    %341 = vector.broadcast %cst_153 : f32 to vector<8x128xf32>
    %342 = arith.subf %310, %341 : vector<8x128xf32>
    %cst_154 = arith.constant 8.000000e-01 : f32
    %343 = vector.broadcast %cst_154 : f32 to vector<8x128xf32>
    %344 = arith.mulf %343, %342 : vector<8x128xf32>
    %cst_155 = arith.constant 0.000000e+00 : f32
    %345 = vector.broadcast %cst_155 : f32 to vector<8x128xf32>
    %346 = arith.addf %344, %345 : vector<8x128xf32>
    %347 = arith.addf %346, %338 : vector<8x128xf32>
    %348 = arith.subf %347, %315 : vector<8x128xf32>
    %349 = arith.cmpf ogt, %348, %340 : vector<8x128xf32>
    %350 = arith.extui %349 : vector<8x128xi1> to vector<8x128xi32>
    %351 = arith.sitofp %350 : vector<8x128xi32> to vector<8x128xf32>
    %cst_156 = arith.constant 0.000000e+00 : f32
    %352 = vector.broadcast %cst_156 : f32 to vector<8x128xf32>
    %353 = arith.select %349, %352, %347 : vector<8x128xi1>, vector<8x128xf32>
    %cst_157 = arith.constant 9.900000e-01 : f32
    %354 = vector.broadcast %cst_157 : f32 to vector<8x128xf32>
    %355 = arith.mulf %354, %315 : vector<8x128xf32>
    %cst_158 = arith.constant 5.000000e-02 : f32
    %356 = vector.broadcast %cst_158 : f32 to vector<8x128xf32>
    %357 = arith.mulf %356, %351 : vector<8x128xf32>
    %358 = arith.addf %355, %357 : vector<8x128xf32>
    %359 = arith.addf %316, %351 : vector<8x128xf32>
    %c8 = arith.constant 8 : index
    %c0_159 = arith.constant 0 : index
    %c0_160 = arith.constant 0 : index
    %360 = vector.load %arg5[%c8, %c0_159, %c0_160] : memref<16x8x128xf32, #tpu.memory_space<vmem>>, vector<1x8x128xf32>
    %361 = vector.shape_cast %360 : vector<1x8x128xf32> to vector<8x128xf32>
    %cst_161 = arith.constant 0.000000e+00 : f32
    %362 = vector.broadcast %cst_161 : f32 to vector<8x128xf32>
    %363 = arith.subf %331, %362 : vector<8x128xf32>
    %cst_162 = arith.constant 8.000000e-01 : f32
    %364 = vector.broadcast %cst_162 : f32 to vector<8x128xf32>
    %365 = arith.mulf %364, %363 : vector<8x128xf32>
    %cst_163 = arith.constant 0.000000e+00 : f32
    %366 = vector.broadcast %cst_163 : f32 to vector<8x128xf32>
    %367 = arith.addf %365, %366 : vector<8x128xf32>
    %368 = arith.addf %367, %10 : vector<8x128xf32>
    %369 = arith.subf %368, %336 : vector<8x128xf32>
    %370 = arith.cmpf ogt, %369, %361 : vector<8x128xf32>
    %371 = arith.extui %370 : vector<8x128xi1> to vector<8x128xi32>
    %372 = arith.sitofp %371 : vector<8x128xi32> to vector<8x128xf32>
    %cst_164 = arith.constant 0.000000e+00 : f32
    %373 = vector.broadcast %cst_164 : f32 to vector<8x128xf32>
    %374 = arith.select %370, %373, %368 : vector<8x128xi1>, vector<8x128xf32>
    %cst_165 = arith.constant 9.900000e-01 : f32
    %375 = vector.broadcast %cst_165 : f32 to vector<8x128xf32>
    %376 = arith.mulf %375, %336 : vector<8x128xf32>
    %cst_166 = arith.constant 5.000000e-02 : f32
    %377 = vector.broadcast %cst_166 : f32 to vector<8x128xf32>
    %378 = arith.mulf %377, %372 : vector<8x128xf32>
    %379 = arith.addf %376, %378 : vector<8x128xf32>
    %cst_167 = arith.constant dense<0.000000e+00> : vector<8x128xf32>
    %380 = tpu.matmul %372, %2, %cst_167 {dimension_numbers = #tpu.dot_dimension_numbers<[1], [0], [0], [1], [0, 0, 1, 1], [], []>} : vector<8x128xf32>, vector<128x128xf32>, vector<8x128xf32> -> vector<8x128xf32>
    %381 = arith.addf %380, %8 : vector<8x128xf32>
    %c8_168 = arith.constant 8 : index
    %c0_169 = arith.constant 0 : index
    %c0_170 = arith.constant 0 : index
    %382 = vector.load %arg6[%c8_168, %c0_169, %c0_170] : memref<16x8x128xf32, #tpu.memory_space<vmem>>, vector<1x8x128xf32>
    %383 = vector.shape_cast %382 : vector<1x8x128xf32> to vector<8x128xf32>
    %cst_171 = arith.constant 0.000000e+00 : f32
    %384 = vector.broadcast %cst_171 : f32 to vector<8x128xf32>
    %385 = arith.subf %353, %384 : vector<8x128xf32>
    %cst_172 = arith.constant 8.000000e-01 : f32
    %386 = vector.broadcast %cst_172 : f32 to vector<8x128xf32>
    %387 = arith.mulf %386, %385 : vector<8x128xf32>
    %cst_173 = arith.constant 0.000000e+00 : f32
    %388 = vector.broadcast %cst_173 : f32 to vector<8x128xf32>
    %389 = arith.addf %387, %388 : vector<8x128xf32>
    %390 = arith.addf %389, %381 : vector<8x128xf32>
    %391 = arith.subf %390, %358 : vector<8x128xf32>
    %392 = arith.cmpf ogt, %391, %383 : vector<8x128xf32>
    %393 = arith.extui %392 : vector<8x128xi1> to vector<8x128xi32>
    %394 = arith.sitofp %393 : vector<8x128xi32> to vector<8x128xf32>
    %cst_174 = arith.constant 0.000000e+00 : f32
    %395 = vector.broadcast %cst_174 : f32 to vector<8x128xf32>
    %396 = arith.select %392, %395, %390 : vector<8x128xi1>, vector<8x128xf32>
    %cst_175 = arith.constant 9.900000e-01 : f32
    %397 = vector.broadcast %cst_175 : f32 to vector<8x128xf32>
    %398 = arith.mulf %397, %358 : vector<8x128xf32>
    %cst_176 = arith.constant 5.000000e-02 : f32
    %399 = vector.broadcast %cst_176 : f32 to vector<8x128xf32>
    %400 = arith.mulf %399, %394 : vector<8x128xf32>
    %401 = arith.addf %398, %400 : vector<8x128xf32>
    %402 = arith.addf %359, %394 : vector<8x128xf32>
    %c9 = arith.constant 9 : index
    %c0_177 = arith.constant 0 : index
    %c0_178 = arith.constant 0 : index
    %403 = vector.load %arg5[%c9, %c0_177, %c0_178] : memref<16x8x128xf32, #tpu.memory_space<vmem>>, vector<1x8x128xf32>
    %404 = vector.shape_cast %403 : vector<1x8x128xf32> to vector<8x128xf32>
    %cst_179 = arith.constant 0.000000e+00 : f32
    %405 = vector.broadcast %cst_179 : f32 to vector<8x128xf32>
    %406 = arith.subf %374, %405 : vector<8x128xf32>
    %cst_180 = arith.constant 8.000000e-01 : f32
    %407 = vector.broadcast %cst_180 : f32 to vector<8x128xf32>
    %408 = arith.mulf %407, %406 : vector<8x128xf32>
    %cst_181 = arith.constant 0.000000e+00 : f32
    %409 = vector.broadcast %cst_181 : f32 to vector<8x128xf32>
    %410 = arith.addf %408, %409 : vector<8x128xf32>
    %411 = arith.addf %410, %10 : vector<8x128xf32>
    %412 = arith.subf %411, %379 : vector<8x128xf32>
    %413 = arith.cmpf ogt, %412, %404 : vector<8x128xf32>
    %414 = arith.extui %413 : vector<8x128xi1> to vector<8x128xi32>
    %415 = arith.sitofp %414 : vector<8x128xi32> to vector<8x128xf32>
    %cst_182 = arith.constant 0.000000e+00 : f32
    %416 = vector.broadcast %cst_182 : f32 to vector<8x128xf32>
    %417 = arith.select %413, %416, %411 : vector<8x128xi1>, vector<8x128xf32>
    %cst_183 = arith.constant 9.900000e-01 : f32
    %418 = vector.broadcast %cst_183 : f32 to vector<8x128xf32>
    %419 = arith.mulf %418, %379 : vector<8x128xf32>
    %cst_184 = arith.constant 5.000000e-02 : f32
    %420 = vector.broadcast %cst_184 : f32 to vector<8x128xf32>
    %421 = arith.mulf %420, %415 : vector<8x128xf32>
    %422 = arith.addf %419, %421 : vector<8x128xf32>
    %cst_185 = arith.constant dense<0.000000e+00> : vector<8x128xf32>
    %423 = tpu.matmul %415, %2, %cst_185 {dimension_numbers = #tpu.dot_dimension_numbers<[1], [0], [0], [1], [0, 0, 1, 1], [], []>} : vector<8x128xf32>, vector<128x128xf32>, vector<8x128xf32> -> vector<8x128xf32>
    %424 = arith.addf %423, %8 : vector<8x128xf32>
    %c9_186 = arith.constant 9 : index
    %c0_187 = arith.constant 0 : index
    %c0_188 = arith.constant 0 : index
    %425 = vector.load %arg6[%c9_186, %c0_187, %c0_188] : memref<16x8x128xf32, #tpu.memory_space<vmem>>, vector<1x8x128xf32>
    %426 = vector.shape_cast %425 : vector<1x8x128xf32> to vector<8x128xf32>
    %cst_189 = arith.constant 0.000000e+00 : f32
    %427 = vector.broadcast %cst_189 : f32 to vector<8x128xf32>
    %428 = arith.subf %396, %427 : vector<8x128xf32>
    %cst_190 = arith.constant 8.000000e-01 : f32
    %429 = vector.broadcast %cst_190 : f32 to vector<8x128xf32>
    %430 = arith.mulf %429, %428 : vector<8x128xf32>
    %cst_191 = arith.constant 0.000000e+00 : f32
    %431 = vector.broadcast %cst_191 : f32 to vector<8x128xf32>
    %432 = arith.addf %430, %431 : vector<8x128xf32>
    %433 = arith.addf %432, %424 : vector<8x128xf32>
    %434 = arith.subf %433, %401 : vector<8x128xf32>
    %435 = arith.cmpf ogt, %434, %426 : vector<8x128xf32>
    %436 = arith.extui %435 : vector<8x128xi1> to vector<8x128xi32>
    %437 = arith.sitofp %436 : vector<8x128xi32> to vector<8x128xf32>
    %cst_192 = arith.constant 0.000000e+00 : f32
    %438 = vector.broadcast %cst_192 : f32 to vector<8x128xf32>
    %439 = arith.select %435, %438, %433 : vector<8x128xi1>, vector<8x128xf32>
    %cst_193 = arith.constant 9.900000e-01 : f32
    %440 = vector.broadcast %cst_193 : f32 to vector<8x128xf32>
    %441 = arith.mulf %440, %401 : vector<8x128xf32>
    %cst_194 = arith.constant 5.000000e-02 : f32
    %442 = vector.broadcast %cst_194 : f32 to vector<8x128xf32>
    %443 = arith.mulf %442, %437 : vector<8x128xf32>
    %444 = arith.addf %441, %443 : vector<8x128xf32>
    %445 = arith.addf %402, %437 : vector<8x128xf32>
    %c10 = arith.constant 10 : index
    %c0_195 = arith.constant 0 : index
    %c0_196 = arith.constant 0 : index
    %446 = vector.load %arg5[%c10, %c0_195, %c0_196] : memref<16x8x128xf32, #tpu.memory_space<vmem>>, vector<1x8x128xf32>
    %447 = vector.shape_cast %446 : vector<1x8x128xf32> to vector<8x128xf32>
    %cst_197 = arith.constant 0.000000e+00 : f32
    %448 = vector.broadcast %cst_197 : f32 to vector<8x128xf32>
    %449 = arith.subf %417, %448 : vector<8x128xf32>
    %cst_198 = arith.constant 8.000000e-01 : f32
    %450 = vector.broadcast %cst_198 : f32 to vector<8x128xf32>
    %451 = arith.mulf %450, %449 : vector<8x128xf32>
    %cst_199 = arith.constant 0.000000e+00 : f32
    %452 = vector.broadcast %cst_199 : f32 to vector<8x128xf32>
    %453 = arith.addf %451, %452 : vector<8x128xf32>
    %454 = arith.addf %453, %10 : vector<8x128xf32>
    %455 = arith.subf %454, %422 : vector<8x128xf32>
    %456 = arith.cmpf ogt, %455, %447 : vector<8x128xf32>
    %457 = arith.extui %456 : vector<8x128xi1> to vector<8x128xi32>
    %458 = arith.sitofp %457 : vector<8x128xi32> to vector<8x128xf32>
    %cst_200 = arith.constant 0.000000e+00 : f32
    %459 = vector.broadcast %cst_200 : f32 to vector<8x128xf32>
    %460 = arith.select %456, %459, %454 : vector<8x128xi1>, vector<8x128xf32>
    %cst_201 = arith.constant 9.900000e-01 : f32
    %461 = vector.broadcast %cst_201 : f32 to vector<8x128xf32>
    %462 = arith.mulf %461, %422 : vector<8x128xf32>
    %cst_202 = arith.constant 5.000000e-02 : f32
    %463 = vector.broadcast %cst_202 : f32 to vector<8x128xf32>
    %464 = arith.mulf %463, %458 : vector<8x128xf32>
    %465 = arith.addf %462, %464 : vector<8x128xf32>
    %cst_203 = arith.constant dense<0.000000e+00> : vector<8x128xf32>
    %466 = tpu.matmul %458, %2, %cst_203 {dimension_numbers = #tpu.dot_dimension_numbers<[1], [0], [0], [1], [0, 0, 1, 1], [], []>} : vector<8x128xf32>, vector<128x128xf32>, vector<8x128xf32> -> vector<8x128xf32>
    %467 = arith.addf %466, %8 : vector<8x128xf32>
    %c10_204 = arith.constant 10 : index
    %c0_205 = arith.constant 0 : index
    %c0_206 = arith.constant 0 : index
    %468 = vector.load %arg6[%c10_204, %c0_205, %c0_206] : memref<16x8x128xf32, #tpu.memory_space<vmem>>, vector<1x8x128xf32>
    %469 = vector.shape_cast %468 : vector<1x8x128xf32> to vector<8x128xf32>
    %cst_207 = arith.constant 0.000000e+00 : f32
    %470 = vector.broadcast %cst_207 : f32 to vector<8x128xf32>
    %471 = arith.subf %439, %470 : vector<8x128xf32>
    %cst_208 = arith.constant 8.000000e-01 : f32
    %472 = vector.broadcast %cst_208 : f32 to vector<8x128xf32>
    %473 = arith.mulf %472, %471 : vector<8x128xf32>
    %cst_209 = arith.constant 0.000000e+00 : f32
    %474 = vector.broadcast %cst_209 : f32 to vector<8x128xf32>
    %475 = arith.addf %473, %474 : vector<8x128xf32>
    %476 = arith.addf %475, %467 : vector<8x128xf32>
    %477 = arith.subf %476, %444 : vector<8x128xf32>
    %478 = arith.cmpf ogt, %477, %469 : vector<8x128xf32>
    %479 = arith.extui %478 : vector<8x128xi1> to vector<8x128xi32>
    %480 = arith.sitofp %479 : vector<8x128xi32> to vector<8x128xf32>
    %cst_210 = arith.constant 0.000000e+00 : f32
    %481 = vector.broadcast %cst_210 : f32 to vector<8x128xf32>
    %482 = arith.select %478, %481, %476 : vector<8x128xi1>, vector<8x128xf32>
    %cst_211 = arith.constant 9.900000e-01 : f32
    %483 = vector.broadcast %cst_211 : f32 to vector<8x128xf32>
    %484 = arith.mulf %483, %444 : vector<8x128xf32>
    %cst_212 = arith.constant 5.000000e-02 : f32
    %485 = vector.broadcast %cst_212 : f32 to vector<8x128xf32>
    %486 = arith.mulf %485, %480 : vector<8x128xf32>
    %487 = arith.addf %484, %486 : vector<8x128xf32>
    %488 = arith.addf %445, %480 : vector<8x128xf32>
    %c11 = arith.constant 11 : index
    %c0_213 = arith.constant 0 : index
    %c0_214 = arith.constant 0 : index
    %489 = vector.load %arg5[%c11, %c0_213, %c0_214] : memref<16x8x128xf32, #tpu.memory_space<vmem>>, vector<1x8x128xf32>
    %490 = vector.shape_cast %489 : vector<1x8x128xf32> to vector<8x128xf32>
    %cst_215 = arith.constant 0.000000e+00 : f32
    %491 = vector.broadcast %cst_215 : f32 to vector<8x128xf32>
    %492 = arith.subf %460, %491 : vector<8x128xf32>
    %cst_216 = arith.constant 8.000000e-01 : f32
    %493 = vector.broadcast %cst_216 : f32 to vector<8x128xf32>
    %494 = arith.mulf %493, %492 : vector<8x128xf32>
    %cst_217 = arith.constant 0.000000e+00 : f32
    %495 = vector.broadcast %cst_217 : f32 to vector<8x128xf32>
    %496 = arith.addf %494, %495 : vector<8x128xf32>
    %497 = arith.addf %496, %10 : vector<8x128xf32>
    %498 = arith.subf %497, %465 : vector<8x128xf32>
    %499 = arith.cmpf ogt, %498, %490 : vector<8x128xf32>
    %500 = arith.extui %499 : vector<8x128xi1> to vector<8x128xi32>
    %501 = arith.sitofp %500 : vector<8x128xi32> to vector<8x128xf32>
    %cst_218 = arith.constant 0.000000e+00 : f32
    %502 = vector.broadcast %cst_218 : f32 to vector<8x128xf32>
    %503 = arith.select %499, %502, %497 : vector<8x128xi1>, vector<8x128xf32>
    %cst_219 = arith.constant 9.900000e-01 : f32
    %504 = vector.broadcast %cst_219 : f32 to vector<8x128xf32>
    %505 = arith.mulf %504, %465 : vector<8x128xf32>
    %cst_220 = arith.constant 5.000000e-02 : f32
    %506 = vector.broadcast %cst_220 : f32 to vector<8x128xf32>
    %507 = arith.mulf %506, %501 : vector<8x128xf32>
    %508 = arith.addf %505, %507 : vector<8x128xf32>
    %cst_221 = arith.constant dense<0.000000e+00> : vector<8x128xf32>
    %509 = tpu.matmul %501, %2, %cst_221 {dimension_numbers = #tpu.dot_dimension_numbers<[1], [0], [0], [1], [0, 0, 1, 1], [], []>} : vector<8x128xf32>, vector<128x128xf32>, vector<8x128xf32> -> vector<8x128xf32>
    %510 = arith.addf %509, %8 : vector<8x128xf32>
    %c11_222 = arith.constant 11 : index
    %c0_223 = arith.constant 0 : index
    %c0_224 = arith.constant 0 : index
    %511 = vector.load %arg6[%c11_222, %c0_223, %c0_224] : memref<16x8x128xf32, #tpu.memory_space<vmem>>, vector<1x8x128xf32>
    %512 = vector.shape_cast %511 : vector<1x8x128xf32> to vector<8x128xf32>
    %cst_225 = arith.constant 0.000000e+00 : f32
    %513 = vector.broadcast %cst_225 : f32 to vector<8x128xf32>
    %514 = arith.subf %482, %513 : vector<8x128xf32>
    %cst_226 = arith.constant 8.000000e-01 : f32
    %515 = vector.broadcast %cst_226 : f32 to vector<8x128xf32>
    %516 = arith.mulf %515, %514 : vector<8x128xf32>
    %cst_227 = arith.constant 0.000000e+00 : f32
    %517 = vector.broadcast %cst_227 : f32 to vector<8x128xf32>
    %518 = arith.addf %516, %517 : vector<8x128xf32>
    %519 = arith.addf %518, %510 : vector<8x128xf32>
    %520 = arith.subf %519, %487 : vector<8x128xf32>
    %521 = arith.cmpf ogt, %520, %512 : vector<8x128xf32>
    %522 = arith.extui %521 : vector<8x128xi1> to vector<8x128xi32>
    %523 = arith.sitofp %522 : vector<8x128xi32> to vector<8x128xf32>
    %cst_228 = arith.constant 0.000000e+00 : f32
    %524 = vector.broadcast %cst_228 : f32 to vector<8x128xf32>
    %525 = arith.select %521, %524, %519 : vector<8x128xi1>, vector<8x128xf32>
    %cst_229 = arith.constant 9.900000e-01 : f32
    %526 = vector.broadcast %cst_229 : f32 to vector<8x128xf32>
    %527 = arith.mulf %526, %487 : vector<8x128xf32>
    %cst_230 = arith.constant 5.000000e-02 : f32
    %528 = vector.broadcast %cst_230 : f32 to vector<8x128xf32>
    %529 = arith.mulf %528, %523 : vector<8x128xf32>
    %530 = arith.addf %527, %529 : vector<8x128xf32>
    %531 = arith.addf %488, %523 : vector<8x128xf32>
    %c12 = arith.constant 12 : index
    %c0_231 = arith.constant 0 : index
    %c0_232 = arith.constant 0 : index
    %532 = vector.load %arg5[%c12, %c0_231, %c0_232] : memref<16x8x128xf32, #tpu.memory_space<vmem>>, vector<1x8x128xf32>
    %533 = vector.shape_cast %532 : vector<1x8x128xf32> to vector<8x128xf32>
    %cst_233 = arith.constant 0.000000e+00 : f32
    %534 = vector.broadcast %cst_233 : f32 to vector<8x128xf32>
    %535 = arith.subf %503, %534 : vector<8x128xf32>
    %cst_234 = arith.constant 8.000000e-01 : f32
    %536 = vector.broadcast %cst_234 : f32 to vector<8x128xf32>
    %537 = arith.mulf %536, %535 : vector<8x128xf32>
    %cst_235 = arith.constant 0.000000e+00 : f32
    %538 = vector.broadcast %cst_235 : f32 to vector<8x128xf32>
    %539 = arith.addf %537, %538 : vector<8x128xf32>
    %540 = arith.addf %539, %10 : vector<8x128xf32>
    %541 = arith.subf %540, %508 : vector<8x128xf32>
    %542 = arith.cmpf ogt, %541, %533 : vector<8x128xf32>
    %543 = arith.extui %542 : vector<8x128xi1> to vector<8x128xi32>
    %544 = arith.sitofp %543 : vector<8x128xi32> to vector<8x128xf32>
    %cst_236 = arith.constant 0.000000e+00 : f32
    %545 = vector.broadcast %cst_236 : f32 to vector<8x128xf32>
    %546 = arith.select %542, %545, %540 : vector<8x128xi1>, vector<8x128xf32>
    %cst_237 = arith.constant 9.900000e-01 : f32
    %547 = vector.broadcast %cst_237 : f32 to vector<8x128xf32>
    %548 = arith.mulf %547, %508 : vector<8x128xf32>
    %cst_238 = arith.constant 5.000000e-02 : f32
    %549 = vector.broadcast %cst_238 : f32 to vector<8x128xf32>
    %550 = arith.mulf %549, %544 : vector<8x128xf32>
    %551 = arith.addf %548, %550 : vector<8x128xf32>
    %cst_239 = arith.constant dense<0.000000e+00> : vector<8x128xf32>
    %552 = tpu.matmul %544, %2, %cst_239 {dimension_numbers = #tpu.dot_dimension_numbers<[1], [0], [0], [1], [0, 0, 1, 1], [], []>} : vector<8x128xf32>, vector<128x128xf32>, vector<8x128xf32> -> vector<8x128xf32>
    %553 = arith.addf %552, %8 : vector<8x128xf32>
    %c12_240 = arith.constant 12 : index
    %c0_241 = arith.constant 0 : index
    %c0_242 = arith.constant 0 : index
    %554 = vector.load %arg6[%c12_240, %c0_241, %c0_242] : memref<16x8x128xf32, #tpu.memory_space<vmem>>, vector<1x8x128xf32>
    %555 = vector.shape_cast %554 : vector<1x8x128xf32> to vector<8x128xf32>
    %cst_243 = arith.constant 0.000000e+00 : f32
    %556 = vector.broadcast %cst_243 : f32 to vector<8x128xf32>
    %557 = arith.subf %525, %556 : vector<8x128xf32>
    %cst_244 = arith.constant 8.000000e-01 : f32
    %558 = vector.broadcast %cst_244 : f32 to vector<8x128xf32>
    %559 = arith.mulf %558, %557 : vector<8x128xf32>
    %cst_245 = arith.constant 0.000000e+00 : f32
    %560 = vector.broadcast %cst_245 : f32 to vector<8x128xf32>
    %561 = arith.addf %559, %560 : vector<8x128xf32>
    %562 = arith.addf %561, %553 : vector<8x128xf32>
    %563 = arith.subf %562, %530 : vector<8x128xf32>
    %564 = arith.cmpf ogt, %563, %555 : vector<8x128xf32>
    %565 = arith.extui %564 : vector<8x128xi1> to vector<8x128xi32>
    %566 = arith.sitofp %565 : vector<8x128xi32> to vector<8x128xf32>
    %cst_246 = arith.constant 0.000000e+00 : f32
    %567 = vector.broadcast %cst_246 : f32 to vector<8x128xf32>
    %568 = arith.select %564, %567, %562 : vector<8x128xi1>, vector<8x128xf32>
    %cst_247 = arith.constant 9.900000e-01 : f32
    %569 = vector.broadcast %cst_247 : f32 to vector<8x128xf32>
    %570 = arith.mulf %569, %530 : vector<8x128xf32>
    %cst_248 = arith.constant 5.000000e-02 : f32
    %571 = vector.broadcast %cst_248 : f32 to vector<8x128xf32>
    %572 = arith.mulf %571, %566 : vector<8x128xf32>
    %573 = arith.addf %570, %572 : vector<8x128xf32>
    %574 = arith.addf %531, %566 : vector<8x128xf32>
    %c13 = arith.constant 13 : index
    %c0_249 = arith.constant 0 : index
    %c0_250 = arith.constant 0 : index
    %575 = vector.load %arg5[%c13, %c0_249, %c0_250] : memref<16x8x128xf32, #tpu.memory_space<vmem>>, vector<1x8x128xf32>
    %576 = vector.shape_cast %575 : vector<1x8x128xf32> to vector<8x128xf32>
    %cst_251 = arith.constant 0.000000e+00 : f32
    %577 = vector.broadcast %cst_251 : f32 to vector<8x128xf32>
    %578 = arith.subf %546, %577 : vector<8x128xf32>
    %cst_252 = arith.constant 8.000000e-01 : f32
    %579 = vector.broadcast %cst_252 : f32 to vector<8x128xf32>
    %580 = arith.mulf %579, %578 : vector<8x128xf32>
    %cst_253 = arith.constant 0.000000e+00 : f32
    %581 = vector.broadcast %cst_253 : f32 to vector<8x128xf32>
    %582 = arith.addf %580, %581 : vector<8x128xf32>
    %583 = arith.addf %582, %10 : vector<8x128xf32>
    %584 = arith.subf %583, %551 : vector<8x128xf32>
    %585 = arith.cmpf ogt, %584, %576 : vector<8x128xf32>
    %586 = arith.extui %585 : vector<8x128xi1> to vector<8x128xi32>
    %587 = arith.sitofp %586 : vector<8x128xi32> to vector<8x128xf32>
    %cst_254 = arith.constant 0.000000e+00 : f32
    %588 = vector.broadcast %cst_254 : f32 to vector<8x128xf32>
    %589 = arith.select %585, %588, %583 : vector<8x128xi1>, vector<8x128xf32>
    %cst_255 = arith.constant 9.900000e-01 : f32
    %590 = vector.broadcast %cst_255 : f32 to vector<8x128xf32>
    %591 = arith.mulf %590, %551 : vector<8x128xf32>
    %cst_256 = arith.constant 5.000000e-02 : f32
    %592 = vector.broadcast %cst_256 : f32 to vector<8x128xf32>
    %593 = arith.mulf %592, %587 : vector<8x128xf32>
    %594 = arith.addf %591, %593 : vector<8x128xf32>
    %cst_257 = arith.constant dense<0.000000e+00> : vector<8x128xf32>
    %595 = tpu.matmul %587, %2, %cst_257 {dimension_numbers = #tpu.dot_dimension_numbers<[1], [0], [0], [1], [0, 0, 1, 1], [], []>} : vector<8x128xf32>, vector<128x128xf32>, vector<8x128xf32> -> vector<8x128xf32>
    %596 = arith.addf %595, %8 : vector<8x128xf32>
    %c13_258 = arith.constant 13 : index
    %c0_259 = arith.constant 0 : index
    %c0_260 = arith.constant 0 : index
    %597 = vector.load %arg6[%c13_258, %c0_259, %c0_260] : memref<16x8x128xf32, #tpu.memory_space<vmem>>, vector<1x8x128xf32>
    %598 = vector.shape_cast %597 : vector<1x8x128xf32> to vector<8x128xf32>
    %cst_261 = arith.constant 0.000000e+00 : f32
    %599 = vector.broadcast %cst_261 : f32 to vector<8x128xf32>
    %600 = arith.subf %568, %599 : vector<8x128xf32>
    %cst_262 = arith.constant 8.000000e-01 : f32
    %601 = vector.broadcast %cst_262 : f32 to vector<8x128xf32>
    %602 = arith.mulf %601, %600 : vector<8x128xf32>
    %cst_263 = arith.constant 0.000000e+00 : f32
    %603 = vector.broadcast %cst_263 : f32 to vector<8x128xf32>
    %604 = arith.addf %602, %603 : vector<8x128xf32>
    %605 = arith.addf %604, %596 : vector<8x128xf32>
    %606 = arith.subf %605, %573 : vector<8x128xf32>
    %607 = arith.cmpf ogt, %606, %598 : vector<8x128xf32>
    %608 = arith.extui %607 : vector<8x128xi1> to vector<8x128xi32>
    %609 = arith.sitofp %608 : vector<8x128xi32> to vector<8x128xf32>
    %cst_264 = arith.constant 0.000000e+00 : f32
    %610 = vector.broadcast %cst_264 : f32 to vector<8x128xf32>
    %611 = arith.select %607, %610, %605 : vector<8x128xi1>, vector<8x128xf32>
    %cst_265 = arith.constant 9.900000e-01 : f32
    %612 = vector.broadcast %cst_265 : f32 to vector<8x128xf32>
    %613 = arith.mulf %612, %573 : vector<8x128xf32>
    %cst_266 = arith.constant 5.000000e-02 : f32
    %614 = vector.broadcast %cst_266 : f32 to vector<8x128xf32>
    %615 = arith.mulf %614, %609 : vector<8x128xf32>
    %616 = arith.addf %613, %615 : vector<8x128xf32>
    %617 = arith.addf %574, %609 : vector<8x128xf32>
    %c14 = arith.constant 14 : index
    %c0_267 = arith.constant 0 : index
    %c0_268 = arith.constant 0 : index
    %618 = vector.load %arg5[%c14, %c0_267, %c0_268] : memref<16x8x128xf32, #tpu.memory_space<vmem>>, vector<1x8x128xf32>
    %619 = vector.shape_cast %618 : vector<1x8x128xf32> to vector<8x128xf32>
    %cst_269 = arith.constant 0.000000e+00 : f32
    %620 = vector.broadcast %cst_269 : f32 to vector<8x128xf32>
    %621 = arith.subf %589, %620 : vector<8x128xf32>
    %cst_270 = arith.constant 8.000000e-01 : f32
    %622 = vector.broadcast %cst_270 : f32 to vector<8x128xf32>
    %623 = arith.mulf %622, %621 : vector<8x128xf32>
    %cst_271 = arith.constant 0.000000e+00 : f32
    %624 = vector.broadcast %cst_271 : f32 to vector<8x128xf32>
    %625 = arith.addf %623, %624 : vector<8x128xf32>
    %626 = arith.addf %625, %10 : vector<8x128xf32>
    %627 = arith.subf %626, %594 : vector<8x128xf32>
    %628 = arith.cmpf ogt, %627, %619 : vector<8x128xf32>
    %629 = arith.extui %628 : vector<8x128xi1> to vector<8x128xi32>
    %630 = arith.sitofp %629 : vector<8x128xi32> to vector<8x128xf32>
    %cst_272 = arith.constant 0.000000e+00 : f32
    %631 = vector.broadcast %cst_272 : f32 to vector<8x128xf32>
    %632 = arith.select %628, %631, %626 : vector<8x128xi1>, vector<8x128xf32>
    %cst_273 = arith.constant 9.900000e-01 : f32
    %633 = vector.broadcast %cst_273 : f32 to vector<8x128xf32>
    %634 = arith.mulf %633, %594 : vector<8x128xf32>
    %cst_274 = arith.constant 5.000000e-02 : f32
    %635 = vector.broadcast %cst_274 : f32 to vector<8x128xf32>
    %636 = arith.mulf %635, %630 : vector<8x128xf32>
    %637 = arith.addf %634, %636 : vector<8x128xf32>
    %cst_275 = arith.constant dense<0.000000e+00> : vector<8x128xf32>
    %638 = tpu.matmul %630, %2, %cst_275 {dimension_numbers = #tpu.dot_dimension_numbers<[1], [0], [0], [1], [0, 0, 1, 1], [], []>} : vector<8x128xf32>, vector<128x128xf32>, vector<8x128xf32> -> vector<8x128xf32>
    %639 = arith.addf %638, %8 : vector<8x128xf32>
    %c14_276 = arith.constant 14 : index
    %c0_277 = arith.constant 0 : index
    %c0_278 = arith.constant 0 : index
    %640 = vector.load %arg6[%c14_276, %c0_277, %c0_278] : memref<16x8x128xf32, #tpu.memory_space<vmem>>, vector<1x8x128xf32>
    %641 = vector.shape_cast %640 : vector<1x8x128xf32> to vector<8x128xf32>
    %cst_279 = arith.constant 0.000000e+00 : f32
    %642 = vector.broadcast %cst_279 : f32 to vector<8x128xf32>
    %643 = arith.subf %611, %642 : vector<8x128xf32>
    %cst_280 = arith.constant 8.000000e-01 : f32
    %644 = vector.broadcast %cst_280 : f32 to vector<8x128xf32>
    %645 = arith.mulf %644, %643 : vector<8x128xf32>
    %cst_281 = arith.constant 0.000000e+00 : f32
    %646 = vector.broadcast %cst_281 : f32 to vector<8x128xf32>
    %647 = arith.addf %645, %646 : vector<8x128xf32>
    %648 = arith.addf %647, %639 : vector<8x128xf32>
    %649 = arith.subf %648, %616 : vector<8x128xf32>
    %650 = arith.cmpf ogt, %649, %641 : vector<8x128xf32>
    %651 = arith.extui %650 : vector<8x128xi1> to vector<8x128xi32>
    %652 = arith.sitofp %651 : vector<8x128xi32> to vector<8x128xf32>
    %cst_282 = arith.constant 0.000000e+00 : f32
    %653 = vector.broadcast %cst_282 : f32 to vector<8x128xf32>
    %654 = arith.select %650, %653, %648 : vector<8x128xi1>, vector<8x128xf32>
    %cst_283 = arith.constant 9.900000e-01 : f32
    %655 = vector.broadcast %cst_283 : f32 to vector<8x128xf32>
    %656 = arith.mulf %655, %616 : vector<8x128xf32>
    %cst_284 = arith.constant 5.000000e-02 : f32
    %657 = vector.broadcast %cst_284 : f32 to vector<8x128xf32>
    %658 = arith.mulf %657, %652 : vector<8x128xf32>
    %659 = arith.addf %656, %658 : vector<8x128xf32>
    %660 = arith.addf %617, %652 : vector<8x128xf32>
    %c15 = arith.constant 15 : index
    %c0_285 = arith.constant 0 : index
    %c0_286 = arith.constant 0 : index
    %661 = vector.load %arg5[%c15, %c0_285, %c0_286] : memref<16x8x128xf32, #tpu.memory_space<vmem>>, vector<1x8x128xf32>
    %662 = vector.shape_cast %661 : vector<1x8x128xf32> to vector<8x128xf32>
    %cst_287 = arith.constant 0.000000e+00 : f32
    %663 = vector.broadcast %cst_287 : f32 to vector<8x128xf32>
    %664 = arith.subf %632, %663 : vector<8x128xf32>
    %cst_288 = arith.constant 8.000000e-01 : f32
    %665 = vector.broadcast %cst_288 : f32 to vector<8x128xf32>
    %666 = arith.mulf %665, %664 : vector<8x128xf32>
    %cst_289 = arith.constant 0.000000e+00 : f32
    %667 = vector.broadcast %cst_289 : f32 to vector<8x128xf32>
    %668 = arith.addf %666, %667 : vector<8x128xf32>
    %669 = arith.addf %668, %10 : vector<8x128xf32>
    %670 = arith.subf %669, %637 : vector<8x128xf32>
    %671 = arith.cmpf ogt, %670, %662 : vector<8x128xf32>
    %672 = arith.extui %671 : vector<8x128xi1> to vector<8x128xi32>
    %673 = arith.sitofp %672 : vector<8x128xi32> to vector<8x128xf32>
    %cst_290 = arith.constant dense<0.000000e+00> : vector<8x128xf32>
    %674 = tpu.matmul %673, %2, %cst_290 {dimension_numbers = #tpu.dot_dimension_numbers<[1], [0], [0], [1], [0, 0, 1, 1], [], []>} : vector<8x128xf32>, vector<128x128xf32>, vector<8x128xf32> -> vector<8x128xf32>
    %675 = arith.addf %674, %8 : vector<8x128xf32>
    %c15_291 = arith.constant 15 : index
    %c0_292 = arith.constant 0 : index
    %c0_293 = arith.constant 0 : index
    %676 = vector.load %arg6[%c15_291, %c0_292, %c0_293] : memref<16x8x128xf32, #tpu.memory_space<vmem>>, vector<1x8x128xf32>
    %677 = vector.shape_cast %676 : vector<1x8x128xf32> to vector<8x128xf32>
    %cst_294 = arith.constant 0.000000e+00 : f32
    %678 = vector.broadcast %cst_294 : f32 to vector<8x128xf32>
    %679 = arith.subf %654, %678 : vector<8x128xf32>
    %cst_295 = arith.constant 8.000000e-01 : f32
    %680 = vector.broadcast %cst_295 : f32 to vector<8x128xf32>
    %681 = arith.mulf %680, %679 : vector<8x128xf32>
    %cst_296 = arith.constant 0.000000e+00 : f32
    %682 = vector.broadcast %cst_296 : f32 to vector<8x128xf32>
    %683 = arith.addf %681, %682 : vector<8x128xf32>
    %684 = arith.addf %683, %675 : vector<8x128xf32>
    %685 = arith.subf %684, %659 : vector<8x128xf32>
    %686 = arith.cmpf ogt, %685, %677 : vector<8x128xf32>
    %687 = arith.extui %686 : vector<8x128xi1> to vector<8x128xi32>
    %688 = arith.sitofp %687 : vector<8x128xi32> to vector<8x128xf32>
    %689 = arith.addf %660, %688 : vector<8x128xf32>
    %cst_297 = arith.constant 6.250000e-02 : f32
    %690 = vector.broadcast %cst_297 : f32 to vector<8x128xf32>
    %691 = arith.mulf %689, %690 : vector<8x128xf32>
    %c0_298 = arith.constant 0 : index
    %c0_299 = arith.constant 0 : index
    %692 = vector.load %arg7[%c0_298, %c0_299] : memref<8x128xf32, #tpu.memory_space<vmem>>, vector<8x128xf32>
    tpu.vector_store %arg7[%c0_298, %c0_299], %691 {strides = array<i32>} : memref<8x128xf32, #tpu.memory_space<vmem>>, vector<8x128xf32>,
    return
  }
}

</mosaic_0001>

<llo_original>
// kernel: adaptive_stochastic_snn.3
$region0: #{adaptive_stochastic_snn.3}
  #allocation0 [shape = 'u32[]', space=smem, size = 0x4, offset = 0x4, fixed_abs, tag = 'smem constant byte address 0x4 - core index']
  #allocation1 [shape = 'u32[72,128]{1,0:T(1,128)}', space=vmem, size = 0x9000, scoped, tag = 'internal scratch']
  %s0 = inlined_call_operand.vmem [shape: f32[8,256], index: 0, kind: input, shape index: {}]
  %s1 = inlined_call_operand.vmem [shape: f32[256,128], index: 1, kind: input, shape index: {}]
  %s2 = inlined_call_operand.vmem [shape: f32[1,128], index: 2, kind: input, shape index: {}]
  %s3 = inlined_call_operand.hbm [shape: f32[128,128], index: 3, kind: input, shape index: {}]
  %s4 = inlined_call_operand.vmem [shape: f32[1,128], index: 4, kind: input, shape index: {}]
  %s5 = inlined_call_operand.vmem [shape: f32[16,8,128], index: 5, kind: input, shape index: {}]
  %s6 = inlined_call_operand.vmem [shape: f32[16,8,128], index: 6, kind: input, shape index: {}]
  %s7 = inlined_call_operand.vmem [shape: f32[8,128], index: 7, kind: output, shape index: {}]
  %s8 = sld [smem:[#allocation0]]
  $region42: #{adaptive_stochastic_snn.3} parent=0
    _
  %s10 = ssub.s32 1, %s8
  %s11 = scalar_select 0, %s10, %s8
  $region1: #{adaptive_stochastic_snn.3} parent=0
    #allocation2 [shape = 'u8[65536]{0}', space=vmem, size = 0x10000, scoped, tag = 'input window, operand 3, single buffered']
    #allocation3 [shape = 's32[1]{0}', space=sflag, size = 0x4, scoped, tag = 'scoped memory for adaptive_stochastic_snn.3']
    %12 = vsyncpa [#allocation3], 0
    // Predicated region
    $region2: #{adaptive_stochastic_snn.3} parent=1 // pred_check
      _
    $region3: #{adaptive_stochastic_snn.3} parent=1 // pred_check_branch
      %14 = sbr.rel (0) target = $region5
    $region4: #{adaptive_stochastic_snn.3} parent=1 // pred_region
      _
    $region5: #{adaptive_stochastic_snn.3} parent=1 // pred_fallthru
      _
    // Predicated region
    $region6: #{adaptive_stochastic_snn.3} parent=1 // pred_check
      _
    $region7: #{adaptive_stochastic_snn.3} parent=1 // pred_check_branch
      %16 = sbr.rel (0) target = $region9
    $region8: #{adaptive_stochastic_snn.3} parent=1 // pred_region
      _
    $region9: #{adaptive_stochastic_snn.3} parent=1 // pred_fallthru
      _
    // Predicated region
    $region10: #{adaptive_stochastic_snn.3} parent=1 // pred_check
      _
    $region11: #{adaptive_stochastic_snn.3} parent=1 // pred_check_branch
      %18 = sbr.rel (0) target = $region13
    $region12: #{adaptive_stochastic_snn.3} parent=1 // pred_region
      _
    $region13: #{adaptive_stochastic_snn.3} parent=1 // pred_fallthru
      _
    // Predicated region
    $region14: #{adaptive_stochastic_snn.3} parent=1 // pred_check
      _
    $region15: #{adaptive_stochastic_snn.3} parent=1 // pred_check_branch
      %20 = sbr.rel (0) target = $region17
    $region16: #{adaptive_stochastic_snn.3} parent=1 // pred_region
      %22 = vsyncadd [#allocation3], 0
      %s23 = sshll.u32 %s3, 4
      %s24 = int_to_ptr.hbm [resolvable:$true] %s23
      %s25 = sshll.u32 [#allocation2], 4
      %s26 = int_to_ptr.vmem [resolvable:$true] %s25
      %31 = dma.hbm_to_vmem [thread:$0]  %s24, 2048, %s26, [#allocation3], 128, 128, 8
    $region17: #{adaptive_stochastic_snn.3} parent=1 // pred_fallthru
      _
    // Predicated region
    $region18: #{adaptive_stochastic_snn.3} parent=1 // pred_check
      _
    $region19: #{adaptive_stochastic_snn.3} parent=1 // pred_check_branch
      %33 = sbr.rel (0) target = $region21
    $region20: #{adaptive_stochastic_snn.3} parent=1 // pred_region
      _
    $region21: #{adaptive_stochastic_snn.3} parent=1 // pred_fallthru
      _
    // Predicated region
    $region22: #{adaptive_stochastic_snn.3} parent=1 // pred_check
      _
    $region23: #{adaptive_stochastic_snn.3} parent=1 // pred_check_branch
      %35 = sbr.rel (0) target = $region25
    $region24: #{adaptive_stochastic_snn.3} parent=1 // pred_region
      _
    $region25: #{adaptive_stochastic_snn.3} parent=1 // pred_fallthru
      _
    // Predicated region
    $region26: #{adaptive_stochastic_snn.3} parent=1 // pred_check
      _
    $region27: #{adaptive_stochastic_snn.3} parent=1 // pred_check_branch
      %37 = sbr.rel (0) target = $region29
    $region28: #{adaptive_stochastic_snn.3} parent=1 // pred_region
      _
    $region29: #{adaptive_stochastic_snn.3} parent=1 // pred_fallthru
      _
    // Predicated region
    $region30: #{adaptive_stochastic_snn.3} parent=1 // pred_check
      _
    $region31: #{adaptive_stochastic_snn.3} parent=1 // pred_check_branch
      %39 = sbr.rel (0) target = $region33
    $region32: #{adaptive_stochastic_snn.3} parent=1 // pred_region
      %41 = dma.done [#allocation3], 2048
    $region33: #{adaptive_stochastic_snn.3} parent=1 // pred_fallthru
      _
    %v42 = vld [vmem:[%s0] sm:$0xff]
    %v43 = vld [vmem:[%s0 + $0x8] sm:$0xff]
    %v44 = vld [vmem:[%s1] sm:$0xff]
    %v45 = vld [vmem:[%s1 + $0x8] sm:$0xff]
    %v46 = vld [vmem:[%s1 + $0x10] sm:$0xff]
    %v47 = vld [vmem:[%s1 + $0x18] sm:$0xff]
    %v48 = vld [vmem:[%s1 + $0x20] sm:$0xff]
    %v49 = vld [vmem:[%s1 + $0x28] sm:$0xff]
    %v50 = vld [vmem:[%s1 + $0x30] sm:$0xff]
    %v51 = vld [vmem:[%s1 + $0x38] sm:$0xff]
    %v52 = vld [vmem:[%s1 + $0x40] sm:$0xff]
    %v53 = vld [vmem:[%s1 + $0x48] sm:$0xff]
    %v54 = vld [vmem:[%s1 + $0x50] sm:$0xff]
    %v55 = vld [vmem:[%s1 + $0x58] sm:$0xff]
    %v56 = vld [vmem:[%s1 + $0x60] sm:$0xff]
    %v57 = vld [vmem:[%s1 + $0x68] sm:$0xff]
    %v58 = vld [vmem:[%s1 + $0x70] sm:$0xff]
    %v59 = vld [vmem:[%s1 + $0x78] sm:$0xff]
    %v60 = vld [vmem:[%s1 + $0x80] sm:$0xff]
    %v61 = vld [vmem:[%s1 + $0x88] sm:$0xff]
    %v62 = vld [vmem:[%s1 + $0x90] sm:$0xff]
    %v63 = vld [vmem:[%s1 + $0x98] sm:$0xff]
    %v64 = vld [vmem:[%s1 + $0xa0] sm:$0xff]
    %v65 = vld [vmem:[%s1 + $0xa8] sm:$0xff]
    %v66 = vld [vmem:[%s1 + $0xb0] sm:$0xff]
    %v67 = vld [vmem:[%s1 + $0xb8] sm:$0xff]
    %v68 = vld [vmem:[%s1 + $0xc0] sm:$0xff]
    %v69 = vld [vmem:[%s1 + $0xc8] sm:$0xff]
    %v70 = vld [vmem:[%s1 + $0xd0] sm:$0xff]
    %v71 = vld [vmem:[%s1 + $0xd8] sm:$0xff]
    %v72 = vld [vmem:[%s1 + $0xe0] sm:$0xff]
    %v73 = vld [vmem:[%s1 + $0xe8] sm:$0xff]
    %v74 = vld [vmem:[%s1 + $0xf0] sm:$0xff]
    %v75 = vld [vmem:[%s1 + $0xf8] sm:$0xff]
    %v76 = vld [vmem:[#allocation2] sm:$0xff]
    %v77 = vld [vmem:[#allocation2 + $0x8] sm:$0xff]
    %v78 = vld [vmem:[#allocation2 + $0x10] sm:$0xff]
    %v79 = vld [vmem:[#allocation2 + $0x18] sm:$0xff]
    %v80 = vld [vmem:[#allocation2 + $0x20] sm:$0xff]
    %v81 = vld [vmem:[#allocation2 + $0x28] sm:$0xff]
    %v82 = vld [vmem:[#allocation2 + $0x30] sm:$0xff]
    %v83 = vld [vmem:[#allocation2 + $0x38] sm:$0xff]
    %v84 = vld [vmem:[#allocation2 + $0x40] sm:$0xff]
    %v85 = vld [vmem:[#allocation2 + $0x48] sm:$0xff]
    %v86 = vld [vmem:[#allocation2 + $0x50] sm:$0xff]
    %v87 = vld [vmem:[#allocation2 + $0x58] sm:$0xff]
    %v88 = vld [vmem:[#allocation2 + $0x60] sm:$0xff]
    %v89 = vld [vmem:[#allocation2 + $0x68] sm:$0xff]
    %v90 = vld [vmem:[#allocation2 + $0x70] sm:$0xff]
    %v91 = vld [vmem:[#allocation2 + $0x78] sm:$0xff]
    %v92 = vld [vmem:[%s2] sm:$0x1]
    %v94 = vperm.slane %v92, 0
    %v96 = vld [vmem:[%s4] sm:$0x1]
    %v98 = vperm.slane %v96, 0
    %100 = vmatpush.msra.mxu0 %v59
    %101 = vmatpush.msra.mxu0 %v58
    %102 = vmatpush.msra.mxu0 %v57
    %103 = vmatpush.msra.mxu0 %v56
    %104 = vmatpush.msra.mxu0 %v55
    %105 = vmatpush.msra.mxu0 %v54
    %106 = vmatpush.msra.mxu0 %v53
    %107 = vmatpush.msra.mxu0 %v52
    %108 = vmatpush.msra.mxu0 %v51
    %109 = vmatpush.msra.mxu0 %v50
    %110 = vmatpush.msra.mxu0 %v49
    %111 = vmatpush.msra.mxu0 %v48
    %112 = vmatpush.msra.mxu0 %v47
    %113 = vmatpush.msra.mxu0 %v46
    %114 = vmatpush.msra.mxu0 %v45
    %115 = vmatpush.msra.mxu0 %v44
    %116 = vmatmul.f32.gmra.mxu0 %v42
    %v117 = vpop.f32.mrf.mxu0
    %v118 = vadd.f32 %v94, %v117
    %119 = vdwg.mxu0
    %120 = vmatpush.msra.mxu0 %v75
    %121 = vmatpush.msra.mxu0 %v74
    %122 = vmatpush.msra.mxu0 %v73
    %123 = vmatpush.msra.mxu0 %v72
    %124 = vmatpush.msra.mxu0 %v71
    %125 = vmatpush.msra.mxu0 %v70
    %126 = vmatpush.msra.mxu0 %v69
    %127 = vmatpush.msra.mxu0 %v68
    %128 = vmatpush.msra.mxu0 %v67
    %129 = vmatpush.msra.mxu0 %v66
    %130 = vmatpush.msra.mxu0 %v65
    %131 = vmatpush.msra.mxu0 %v64
    %132 = vmatpush.msra.mxu0 %v63
    %133 = vmatpush.msra.mxu0 %v62
    %134 = vmatpush.msra.mxu0 %v61
    %135 = vmatpush.msra.mxu0 %v60
    %136 = vmatmul.f32.gmra.mxu0 %v43
    %v137 = vpop.f32.mrf.mxu0
    %v138 = vadd.f32 %v118, %v137
    %139 = vdwg.mxu0
    %v140 = vld [vmem:[%s5] sm:$0xff]
    %v141 = vadd.f32 %v138, 0.0
    %vm142 = vcmp.gt.f32.partialorder %v141, %v140
    %v143 = vsel %vm142, 1, 0
    %v144 = vcvt.s32.f32 %v143
    %v145 = vsel %vm142, 0.0, %v141
    %v146 = vmul.f32 %v144, 0.05
    %v147 = vadd.f32 %v146, 0.0
    %148 = vmatpush.msra.mxu0 %v91
    %149 = vmatpush.msra.mxu0 %v90
    %150 = vmatpush.msra.mxu0 %v89
    %151 = vmatpush.msra.mxu0 %v88
    %152 = vmatpush.msra.mxu0 %v87
    %153 = vmatpush.msra.mxu0 %v86
    %154 = vmatpush.msra.mxu0 %v85
    %155 = vmatpush.msra.mxu0 %v84
    %156 = vmatpush.msra.mxu0 %v83
    %157 = vmatpush.msra.mxu0 %v82
    %158 = vmatpush.msra.mxu0 %v81
    %159 = vmatpush.msra.mxu0 %v80
    %160 = vmatpush.msra.mxu0 %v79
    %161 = vmatpush.msra.mxu0 %v78
    %162 = vmatpush.msra.mxu0 %v77
    %163 = vmatpush.msra.mxu0 %v76
    %164 = vmatmul.f32.gmra.mxu0 %v144
    %v165 = vpop.f32.mrf.mxu0
    %v166 = vadd.f32 %v98, %v165
    %167 = vdwg.mxu0
    %v168 = vld [vmem:[%s6] sm:$0xff]
    %v169 = vadd.f32 %v166, 0.0
    %vm170 = vcmp.gt.f32.partialorder %v169, %v168
    %v171 = vsel %vm170, 1, 0
    %v172 = vcvt.s32.f32 %v171
    %v173 = vsel %vm170, 0.0, %v169
    %v174 = vmul.f32 %v172, 0.05
    %v175 = vadd.f32 %v174, 0.0
    %v176 = vadd.f32 %v172, 0.0
    %s177 = scalar_lea.vmem %s5, 8
    %v178 = vld [vmem:[%s177] sm:$0xff]
    %v179 = vmul.f32 %v145, 0.8
    %v180 = vadd.f32 %v179, 0.0
    %v181 = vadd.f32 %v180, %v138
    %v182 = vsub.f32 %v181, %v147
    %vm183 = vcmp.gt.f32.partialorder %v182, %v178
    %v184 = vsel %vm183, 1, 0
    %v185 = vcvt.s32.f32 %v184
    %v186 = vsel %vm183, 0.0, %v181
    %v187 = vmul.f32 %v147, 0.99
    %v188 = vmul.f32 %v185, 0.05
    %v189 = vadd.f32 %v187, %v188
    %190 = vmatpush.msra.mxu0 %v91
    %191 = vmatpush.msra.mxu0 %v90
    %192 = vmatpush.msra.mxu0 %v89
    %193 = vmatpush.msra.mxu0 %v88
    %194 = vmatpush.msra.mxu0 %v87
    %195 = vmatpush.msra.mxu0 %v86
    %196 = vmatpush.msra.mxu0 %v85
    %197 = vmatpush.msra.mxu0 %v84
    %198 = vmatpush.msra.mxu0 %v83
    %199 = vmatpush.msra.mxu0 %v82
    %200 = vmatpush.msra.mxu0 %v81
    %201 = vmatpush.msra.mxu0 %v80
    %202 = vmatpush.msra.mxu0 %v79
    %203 = vmatpush.msra.mxu0 %v78
    %204 = vmatpush.msra.mxu0 %v77
    %205 = vmatpush.msra.mxu0 %v76
    %206 = vmatmul.f32.gmra.mxu0 %v185
    %v207 = vpop.f32.mrf.mxu0
    %v208 = vadd.f32 %v98, %v207
    %209 = vdwg.mxu0
    %s210 = scalar_lea.vmem %s6, 8
    %v211 = vld [vmem:[%s210] sm:$0xff]
    %v212 = vmul.f32 %v173, 0.8
    %v213 = vadd.f32 %v212, 0.0
    %v214 = vadd.f32 %v213, %v208
    %v215 = vsub.f32 %v214, %v175
    %vm216 = vcmp.gt.f32.partialorder %v215, %v211
    %v217 = vsel %vm216, 1, 0
    %v218 = vcvt.s32.f32 %v217
    %v219 = vsel %vm216, 0.0, %v214
    %v220 = vmul.f32 %v175, 0.99
    %v221 = vmul.f32 %v218, 0.05
    %v222 = vadd.f32 %v220, %v221
    %v223 = vadd.f32 %v176, %v218
    %s224 = scalar_lea.vmem %s5, 16
    %v225 = vld [vmem:[%s224] sm:$0xff]
    %v226 = vmul.f32 %v186, 0.8
    %v227 = vadd.f32 %v226, 0.0
    %v228 = vadd.f32 %v227, %v138
    %v229 = vsub.f32 %v228, %v189
    %vm230 = vcmp.gt.f32.partialorder %v229, %v225
    %v231 = vsel %vm230, 1, 0
    %v232 = vcvt.s32.f32 %v231
    %v233 = vsel %vm230, 0.0, %v228
    %v234 = vmul.f32 %v189, 0.99
    %v235 = vmul.f32 %v232, 0.05
    %v236 = vadd.f32 %v234, %v235
    %237 = vmatpush.msra.mxu0 %v91
    %238 = vmatpush.msra.mxu0 %v90
    %239 = vmatpush.msra.mxu0 %v89
    %240 = vmatpush.msra.mxu0 %v88
    %241 = vmatpush.msra.mxu0 %v87
    %242 = vmatpush.msra.mxu0 %v86
    %243 = vmatpush.msra.mxu0 %v85
    %244 = vmatpush.msra.mxu0 %v84
    %245 = vmatpush.msra.mxu0 %v83
    %246 = vmatpush.msra.mxu0 %v82
    %247 = vmatpush.msra.mxu0 %v81
    %248 = vmatpush.msra.mxu0 %v80
    %249 = vmatpush.msra.mxu0 %v79
    %250 = vmatpush.msra.mxu0 %v78
    %251 = vmatpush.msra.mxu0 %v77
    %252 = vmatpush.msra.mxu0 %v76
    %253 = vmatmul.f32.gmra.mxu0 %v232
    %v254 = vpop.f32.mrf.mxu0
    %v255 = vadd.f32 %v98, %v254
    %256 = vdwg.mxu0
    %s257 = scalar_lea.vmem %s6, 16
    %v258 = vld [vmem:[%s257] sm:$0xff]
    %v259 = vmul.f32 %v219, 0.8
    %v260 = vadd.f32 %v259, 0.0
    %v261 = vadd.f32 %v260, %v255
    %v262 = vsub.f32 %v261, %v222
    %vm263 = vcmp.gt.f32.partialorder %v262, %v258
    %v264 = vsel %vm263, 1, 0
    %v265 = vcvt.s32.f32 %v264
    %v266 = vsel %vm263, 0.0, %v261
    %v267 = vmul.f32 %v222, 0.99
    %v268 = vmul.f32 %v265, 0.05
    %v269 = vadd.f32 %v267, %v268
    %v270 = vadd.f32 %v223, %v265
    %s271 = scalar_lea.vmem %s5, 24
    %v272 = vld [vmem:[%s271] sm:$0xff]
    %v273 = vmul.f32 %v233, 0.8
    %v274 = vadd.f32 %v273, 0.0
    %v275 = vadd.f32 %v274, %v138
    %v276 = vsub.f32 %v275, %v236
    %vm277 = vcmp.gt.f32.partialorder %v276, %v272
    %v278 = vsel %vm277, 1, 0
    %v279 = vcvt.s32.f32 %v278
    %v280 = vsel %vm277, 0.0, %v275
    %v281 = vmul.f32 %v236, 0.99
    %v282 = vmul.f32 %v279, 0.05
    %v283 = vadd.f32 %v281, %v282
    %284 = vmatpush.msra.mxu0 %v91
    %285 = vmatpush.msra.mxu0 %v90
    %286 = vmatpush.msra.mxu0 %v89
    %287 = vmatpush.msra.mxu0 %v88
    %288 = vmatpush.msra.mxu0 %v87
    %289 = vmatpush.msra.mxu0 %v86
    %290 = vmatpush.msra.mxu0 %v85
    %291 = vmatpush.msra.mxu0 %v84
    %292 = vmatpush.msra.mxu0 %v83
    %293 = vmatpush.msra.mxu0 %v82
    %294 = vmatpush.msra.mxu0 %v81
    %295 = vmatpush.msra.mxu0 %v80
    %296 = vmatpush.msra.mxu0 %v79
    %297 = vmatpush.msra.mxu0 %v78
    %298 = vmatpush.msra.mxu0 %v77
    %299 = vmatpush.msra.mxu0 %v76
    %300 = vmatmul.f32.gmra.mxu0 %v279
    %v301 = vpop.f32.mrf.mxu0
    %v302 = vadd.f32 %v98, %v301
    %303 = vdwg.mxu0
    %s304 = scalar_lea.vmem %s6, 24
    %v305 = vld [vmem:[%s304] sm:$0xff]
    %v306 = vmul.f32 %v266, 0.8
    %v307 = vadd.f32 %v306, 0.0
    %v308 = vadd.f32 %v307, %v302
    %v309 = vsub.f32 %v308, %v269
    %vm310 = vcmp.gt.f32.partialorder %v309, %v305
    %v311 = vsel %vm310, 1, 0
    %v312 = vcvt.s32.f32 %v311
    %v313 = vsel %vm310, 0.0, %v308
    %v314 = vmul.f32 %v269, 0.99
    %v315 = vmul.f32 %v312, 0.05
    %v316 = vadd.f32 %v314, %v315
    %v317 = vadd.f32 %v270, %v312
    %s318 = scalar_lea.vmem %s5, 32
    %v319 = vld [vmem:[%s318] sm:$0xff]
    %v320 = vmul.f32 %v280, 0.8
    %v321 = vadd.f32 %v320, 0.0
    %v322 = vadd.f32 %v321, %v138
    %v323 = vsub.f32 %v322, %v283
    %vm324 = vcmp.gt.f32.partialorder %v323, %v319
    %v325 = vsel %vm324, 1, 0
    %v326 = vcvt.s32.f32 %v325
    %v327 = vsel %vm324, 0.0, %v322
    %v328 = vmul.f32 %v283, 0.99
    %v329 = vmul.f32 %v326, 0.05
    %v330 = vadd.f32 %v328, %v329
    %331 = vmatpush.msra.mxu0 %v91
    %332 = vmatpush.msra.mxu0 %v90
    %333 = vmatpush.msra.mxu0 %v89
    %334 = vmatpush.msra.mxu0 %v88
    %335 = vmatpush.msra.mxu0 %v87
    %336 = vmatpush.msra.mxu0 %v86
    %337 = vmatpush.msra.mxu0 %v85
    %338 = vmatpush.msra.mxu0 %v84
    %339 = vmatpush.msra.mxu0 %v83
    %340 = vmatpush.msra.mxu0 %v82
    %341 = vmatpush.msra.mxu0 %v81
    %342 = vmatpush.msra.mxu0 %v80
    %343 = vmatpush.msra.mxu0 %v79
    %344 = vmatpush.msra.mxu0 %v78
    %345 = vmatpush.msra.mxu0 %v77
    %346 = vmatpush.msra.mxu0 %v76
    %347 = vmatmul.f32.gmra.mxu0 %v326
    %v348 = vpop.f32.mrf.mxu0
    %v349 = vadd.f32 %v98, %v348
    %350 = vdwg.mxu0
    %s351 = scalar_lea.vmem %s6, 32
    %v352 = vld [vmem:[%s351] sm:$0xff]
    %v353 = vmul.f32 %v313, 0.8
    %v354 = vadd.f32 %v353, 0.0
    %v355 = vadd.f32 %v354, %v349
    %v356 = vsub.f32 %v355, %v316
    %vm357 = vcmp.gt.f32.partialorder %v356, %v352
    %v358 = vsel %vm357, 1, 0
    %v359 = vcvt.s32.f32 %v358
    %v360 = vsel %vm357, 0.0, %v355
    %v361 = vmul.f32 %v316, 0.99
    %v362 = vmul.f32 %v359, 0.05
    %v363 = vadd.f32 %v361, %v362
    %v364 = vadd.f32 %v317, %v359
    %s365 = scalar_lea.vmem %s5, 40
    %v366 = vld [vmem:[%s365] sm:$0xff]
    %v367 = vmul.f32 %v327, 0.8
    %v368 = vadd.f32 %v367, 0.0
    %v369 = vadd.f32 %v368, %v138
    %v370 = vsub.f32 %v369, %v330
    %vm371 = vcmp.gt.f32.partialorder %v370, %v366
    %v372 = vsel %vm371, 1, 0
    %v373 = vcvt.s32.f32 %v372
    %v374 = vsel %vm371, 0.0, %v369
    %v375 = vmul.f32 %v330, 0.99
    %v376 = vmul.f32 %v373, 0.05
    %v377 = vadd.f32 %v375, %v376
    %378 = vmatpush.msra.mxu0 %v91
    %379 = vmatpush.msra.mxu0 %v90
    %380 = vmatpush.msra.mxu0 %v89
    %381 = vmatpush.msra.mxu0 %v88
    %382 = vmatpush.msra.mxu0 %v87
    %383 = vmatpush.msra.mxu0 %v86
    %384 = vmatpush.msra.mxu0 %v85
    %385 = vmatpush.msra.mxu0 %v84
    %386 = vmatpush.msra.mxu0 %v83
    %387 = vmatpush.msra.mxu0 %v82
    %388 = vmatpush.msra.mxu0 %v81
    %389 = vmatpush.msra.mxu0 %v80
    %390 = vmatpush.msra.mxu0 %v79
    %391 = vmatpush.msra.mxu0 %v78
    %392 = vmatpush.msra.mxu0 %v77
    %393 = vmatpush.msra.mxu0 %v76
    %394 = vmatmul.f32.gmra.mxu0 %v373
    %v395 = vpop.f32.mrf.mxu0
    %v396 = vadd.f32 %v98, %v395
    %397 = vdwg.mxu0
    %s398 = scalar_lea.vmem %s6, 40
    %v399 = vld [vmem:[%s398] sm:$0xff]
    %v400 = vmul.f32 %v360, 0.8
    %v401 = vadd.f32 %v400, 0.0
    %v402 = vadd.f32 %v401, %v396
    %v403 = vsub.f32 %v402, %v363
    %vm404 = vcmp.gt.f32.partialorder %v403, %v399
    %v405 = vsel %vm404, 1, 0
    %v406 = vcvt.s32.f32 %v405
    %v407 = vsel %vm404, 0.0, %v402
    %v408 = vmul.f32 %v363, 0.99
    %v409 = vmul.f32 %v406, 0.05
    %v410 = vadd.f32 %v408, %v409
    %v411 = vadd.f32 %v364, %v406
    %s412 = scalar_lea.vmem %s5, 48
    %v413 = vld [vmem:[%s412] sm:$0xff]
    %v414 = vmul.f32 %v374, 0.8
    %v415 = vadd.f32 %v414, 0.0
    %v416 = vadd.f32 %v415, %v138
    %v417 = vsub.f32 %v416, %v377
    %vm418 = vcmp.gt.f32.partialorder %v417, %v413
    %v419 = vsel %vm418, 1, 0
    %v420 = vcvt.s32.f32 %v419
    %v421 = vsel %vm418, 0.0, %v416
    %v422 = vmul.f32 %v377, 0.99
    %v423 = vmul.f32 %v420, 0.05
    %v424 = vadd.f32 %v422, %v423
    %425 = vmatpush.msra.mxu0 %v91
    %426 = vmatpush.msra.mxu0 %v90
    %427 = vmatpush.msra.mxu0 %v89
    %428 = vmatpush.msra.mxu0 %v88
    %429 = vmatpush.msra.mxu0 %v87
    %430 = vmatpush.msra.mxu0 %v86
    %431 = vmatpush.msra.mxu0 %v85
    %432 = vmatpush.msra.mxu0 %v84
    %433 = vmatpush.msra.mxu0 %v83
    %434 = vmatpush.msra.mxu0 %v82
    %435 = vmatpush.msra.mxu0 %v81
    %436 = vmatpush.msra.mxu0 %v80
    %437 = vmatpush.msra.mxu0 %v79
    %438 = vmatpush.msra.mxu0 %v78
    %439 = vmatpush.msra.mxu0 %v77
    %440 = vmatpush.msra.mxu0 %v76
    %441 = vmatmul.f32.gmra.mxu0 %v420
    %v442 = vpop.f32.mrf.mxu0
    %v443 = vadd.f32 %v98, %v442
    %444 = vdwg.mxu0
    %s445 = scalar_lea.vmem %s6, 48
    %v446 = vld [vmem:[%s445] sm:$0xff]
    %v447 = vmul.f32 %v407, 0.8
    %v448 = vadd.f32 %v447, 0.0
    %v449 = vadd.f32 %v448, %v443
    %v450 = vsub.f32 %v449, %v410
    %vm451 = vcmp.gt.f32.partialorder %v450, %v446
    %v452 = vsel %vm451, 1, 0
    %v453 = vcvt.s32.f32 %v452
    %v454 = vsel %vm451, 0.0, %v449
    %v455 = vmul.f32 %v410, 0.99
    %v456 = vmul.f32 %v453, 0.05
    %v457 = vadd.f32 %v455, %v456
    %v458 = vadd.f32 %v411, %v453
    %s459 = scalar_lea.vmem %s5, 56
    %v460 = vld [vmem:[%s459] sm:$0xff]
    %v461 = vmul.f32 %v421, 0.8
    %v462 = vadd.f32 %v461, 0.0
    %v463 = vadd.f32 %v462, %v138
    %v464 = vsub.f32 %v463, %v424
    %vm465 = vcmp.gt.f32.partialorder %v464, %v460
    %v466 = vsel %vm465, 1, 0
    %v467 = vcvt.s32.f32 %v466
    %v468 = vsel %vm465, 0.0, %v463
    %v469 = vmul.f32 %v424, 0.99
    %v470 = vmul.f32 %v467, 0.05
    %v471 = vadd.f32 %v469, %v470
    %472 = vmatpush.msra.mxu0 %v91
    %473 = vmatpush.msra.mxu0 %v90
    %474 = vmatpush.msra.mxu0 %v89
    %475 = vmatpush.msra.mxu0 %v88
    %476 = vmatpush.msra.mxu0 %v87
    %477 = vmatpush.msra.mxu0 %v86
    %478 = vmatpush.msra.mxu0 %v85
    %479 = vmatpush.msra.mxu0 %v84
    %480 = vmatpush.msra.mxu0 %v83
    %481 = vmatpush.msra.mxu0 %v82
    %482 = vmatpush.msra.mxu0 %v81
    %483 = vmatpush.msra.mxu0 %v80
    %484 = vmatpush.msra.mxu0 %v79
    %485 = vmatpush.msra.mxu0 %v78
    %486 = vmatpush.msra.mxu0 %v77
    %487 = vmatpush.msra.mxu0 %v76
    %488 = vmatmul.f32.gmra.mxu0 %v467
    %v489 = vpop.f32.mrf.mxu0
    %v490 = vadd.f32 %v98, %v489
    %491 = vdwg.mxu0
    %s492 = scalar_lea.vmem %s6, 56
    %v493 = vld [vmem:[%s492] sm:$0xff]
    %v494 = vmul.f32 %v454, 0.8
    %v495 = vadd.f32 %v494, 0.0
    %v496 = vadd.f32 %v495, %v490
    %v497 = vsub.f32 %v496, %v457
    %vm498 = vcmp.gt.f32.partialorder %v497, %v493
    %v499 = vsel %vm498, 1, 0
    %v500 = vcvt.s32.f32 %v499
    %v501 = vsel %vm498, 0.0, %v496
    %v502 = vmul.f32 %v457, 0.99
    %v503 = vmul.f32 %v500, 0.05
    %v504 = vadd.f32 %v502, %v503
    %v505 = vadd.f32 %v458, %v500
    %s506 = scalar_lea.vmem %s5, 64
    %v507 = vld [vmem:[%s506] sm:$0xff]
    %v508 = vmul.f32 %v468, 0.8
    %v509 = vadd.f32 %v508, 0.0
    %v510 = vadd.f32 %v509, %v138
    %v511 = vsub.f32 %v510, %v471
    %vm512 = vcmp.gt.f32.partialorder %v511, %v507
    %v513 = vsel %vm512, 1, 0
    %v514 = vcvt.s32.f32 %v513
    %v515 = vsel %vm512, 0.0, %v510
    %v516 = vmul.f32 %v471, 0.99
    %v517 = vmul.f32 %v514, 0.05
    %v518 = vadd.f32 %v516, %v517
    %519 = vmatpush.msra.mxu0 %v91
    %520 = vmatpush.msra.mxu0 %v90
    %521 = vmatpush.msra.mxu0 %v89
    %522 = vmatpush.msra.mxu0 %v88
    %523 = vmatpush.msra.mxu0 %v87
    %524 = vmatpush.msra.mxu0 %v86
    %525 = vmatpush.msra.mxu0 %v85
    %526 = vmatpush.msra.mxu0 %v84
    %527 = vmatpush.msra.mxu0 %v83
    %528 = vmatpush.msra.mxu0 %v82
    %529 = vmatpush.msra.mxu0 %v81
    %530 = vmatpush.msra.mxu0 %v80
    %531 = vmatpush.msra.mxu0 %v79
    %532 = vmatpush.msra.mxu0 %v78
    %533 = vmatpush.msra.mxu0 %v77
    %534 = vmatpush.msra.mxu0 %v76
    %535 = vmatmul.f32.gmra.mxu0 %v514
    %v536 = vpop.f32.mrf.mxu0
    %v537 = vadd.f32 %v98, %v536
    %538 = vdwg.mxu0
    %s539 = scalar_lea.vmem %s6, 64
    %v540 = vld [vmem:[%s539] sm:$0xff]
    %v541 = vmul.f32 %v501, 0.8
    %v542 = vadd.f32 %v541, 0.0
    %v543 = vadd.f32 %v542, %v537
    %v544 = vsub.f32 %v543, %v504
    %vm545 = vcmp.gt.f32.partialorder %v544, %v540
    %v546 = vsel %vm545, 1, 0
    %v547 = vcvt.s32.f32 %v546
    %v548 = vsel %vm545, 0.0, %v543
    %v549 = vmul.f32 %v504, 0.99
    %v550 = vmul.f32 %v547, 0.05
    %v551 = vadd.f32 %v549, %v550
    %v552 = vadd.f32 %v505, %v547
    %s553 = scalar_lea.vmem %s5, 72
    %v554 = vld [vmem:[%s553] sm:$0xff]
    %v555 = vmul.f32 %v515, 0.8
    %v556 = vadd.f32 %v555, 0.0
    %v557 = vadd.f32 %v556, %v138
    %v558 = vsub.f32 %v557, %v518
    %vm559 = vcmp.gt.f32.partialorder %v558, %v554
    %v560 = vsel %vm559, 1, 0
    %v561 = vcvt.s32.f32 %v560
    %v562 = vsel %vm559, 0.0, %v557
    %v563 = vmul.f32 %v518, 0.99
    %v564 = vmul.f32 %v561, 0.05
    %v565 = vadd.f32 %v563, %v564
    %566 = vmatpush.msra.mxu0 %v91
    %567 = vmatpush.msra.mxu0 %v90
    %568 = vmatpush.msra.mxu0 %v89
    %569 = vmatpush.msra.mxu0 %v88
    %570 = vmatpush.msra.mxu0 %v87
    %571 = vmatpush.msra.mxu0 %v86
    %572 = vmatpush.msra.mxu0 %v85
    %573 = vmatpush.msra.mxu0 %v84
    %574 = vmatpush.msra.mxu0 %v83
    %575 = vmatpush.msra.mxu0 %v82
    %576 = vmatpush.msra.mxu0 %v81
    %577 = vmatpush.msra.mxu0 %v80
    %578 = vmatpush.msra.mxu0 %v79
    %579 = vmatpush.msra.mxu0 %v78
    %580 = vmatpush.msra.mxu0 %v77
    %581 = vmatpush.msra.mxu0 %v76
    %582 = vmatmul.f32.gmra.mxu0 %v561
    %v583 = vpop.f32.mrf.mxu0
    %v584 = vadd.f32 %v98, %v583
    %585 = vdwg.mxu0
    %s586 = scalar_lea.vmem %s6, 72
    %v587 = vld [vmem:[%s586] sm:$0xff]
    %v588 = vmul.f32 %v548, 0.8
    %v589 = vadd.f32 %v588, 0.0
    %v590 = vadd.f32 %v589, %v584
    %v591 = vsub.f32 %v590, %v551
    %vm592 = vcmp.gt.f32.partialorder %v591, %v587
    %v593 = vsel %vm592, 1, 0
    %v594 = vcvt.s32.f32 %v593
    %v595 = vsel %vm592, 0.0, %v590
    %v596 = vmul.f32 %v551, 0.99
    %v597 = vmul.f32 %v594, 0.05
    %v598 = vadd.f32 %v596, %v597
    %v599 = vadd.f32 %v552, %v594
    %s600 = scalar_lea.vmem %s5, 80
    %v601 = vld [vmem:[%s600] sm:$0xff]
    %v602 = vmul.f32 %v562, 0.8
    %v603 = vadd.f32 %v602, 0.0
    %v604 = vadd.f32 %v603, %v138
    %v605 = vsub.f32 %v604, %v565
    %vm606 = vcmp.gt.f32.partialorder %v605, %v601
    %v607 = vsel %vm606, 1, 0
    %v608 = vcvt.s32.f32 %v607
    %v609 = vsel %vm606, 0.0, %v604
    %v610 = vmul.f32 %v565, 0.99
    %v611 = vmul.f32 %v608, 0.05
    %v612 = vadd.f32 %v610, %v611
    %613 = vmatpush.msra.mxu0 %v91
    %614 = vmatpush.msra.mxu0 %v90
    %615 = vmatpush.msra.mxu0 %v89
    %616 = vmatpush.msra.mxu0 %v88
    %617 = vmatpush.msra.mxu0 %v87
    %618 = vmatpush.msra.mxu0 %v86
    %619 = vmatpush.msra.mxu0 %v85
    %620 = vmatpush.msra.mxu0 %v84
    %621 = vmatpush.msra.mxu0 %v83
    %622 = vmatpush.msra.mxu0 %v82
    %623 = vmatpush.msra.mxu0 %v81
    %624 = vmatpush.msra.mxu0 %v80
    %625 = vmatpush.msra.mxu0 %v79
    %626 = vmatpush.msra.mxu0 %v78
    %627 = vmatpush.msra.mxu0 %v77
    %628 = vmatpush.msra.mxu0 %v76
    %629 = vmatmul.f32.gmra.mxu0 %v608
    %v630 = vpop.f32.mrf.mxu0
    %v631 = vadd.f32 %v98, %v630
    %632 = vdwg.mxu0
    %s633 = scalar_lea.vmem %s6, 80
    %v634 = vld [vmem:[%s633] sm:$0xff]
    %v635 = vmul.f32 %v595, 0.8
    %v636 = vadd.f32 %v635, 0.0
    %v637 = vadd.f32 %v636, %v631
    %v638 = vsub.f32 %v637, %v598
    %vm639 = vcmp.gt.f32.partialorder %v638, %v634
    %v640 = vsel %vm639, 1, 0
    %v641 = vcvt.s32.f32 %v640
    %v642 = vsel %vm639, 0.0, %v637
    %v643 = vmul.f32 %v598, 0.99
    %v644 = vmul.f32 %v641, 0.05
    %v645 = vadd.f32 %v643, %v644
    %v646 = vadd.f32 %v599, %v641
    %s647 = scalar_lea.vmem %s5, 88
    %v648 = vld [vmem:[%s647] sm:$0xff]
    %v649 = vmul.f32 %v609, 0.8
    %v650 = vadd.f32 %v649, 0.0
    %v651 = vadd.f32 %v650, %v138
    %v652 = vsub.f32 %v651, %v612
    %vm653 = vcmp.gt.f32.partialorder %v652, %v648
    %v654 = vsel %vm653, 1, 0
    %v655 = vcvt.s32.f32 %v654
    %v656 = vsel %vm653, 0.0, %v651
    %v657 = vmul.f32 %v612, 0.99
    %v658 = vmul.f32 %v655, 0.05
    %v659 = vadd.f32 %v657, %v658
    %660 = vmatpush.msra.mxu0 %v91
    %661 = vmatpush.msra.mxu0 %v90
    %662 = vmatpush.msra.mxu0 %v89
    %663 = vmatpush.msra.mxu0 %v88
    %664 = vmatpush.msra.mxu0 %v87
    %665 = vmatpush.msra.mxu0 %v86
    %666 = vmatpush.msra.mxu0 %v85
    %667 = vmatpush.msra.mxu0 %v84
    %668 = vmatpush.msra.mxu0 %v83
    %669 = vmatpush.msra.mxu0 %v82
    %670 = vmatpush.msra.mxu0 %v81
    %671 = vmatpush.msra.mxu0 %v80
    %672 = vmatpush.msra.mxu0 %v79
    %673 = vmatpush.msra.mxu0 %v78
    %674 = vmatpush.msra.mxu0 %v77
    %675 = vmatpush.msra.mxu0 %v76
    %676 = vmatmul.f32.gmra.mxu0 %v655
    %v677 = vpop.f32.mrf.mxu0
    %v678 = vadd.f32 %v98, %v677
    %679 = vdwg.mxu0
    %s680 = scalar_lea.vmem %s6, 88
    %v681 = vld [vmem:[%s680] sm:$0xff]
    %v682 = vmul.f32 %v642, 0.8
    %v683 = vadd.f32 %v682, 0.0
    %v684 = vadd.f32 %v683, %v678
    %v685 = vsub.f32 %v684, %v645
    %vm686 = vcmp.gt.f32.partialorder %v685, %v681
    %v687 = vsel %vm686, 1, 0
    %v688 = vcvt.s32.f32 %v687
    %v689 = vsel %vm686, 0.0, %v684
    %v690 = vmul.f32 %v645, 0.99
    %v691 = vmul.f32 %v688, 0.05
    %v692 = vadd.f32 %v690, %v691
    %v693 = vadd.f32 %v646, %v688
    %s694 = scalar_lea.vmem %s5, 96
    %v695 = vld [vmem:[%s694] sm:$0xff]
    %v696 = vmul.f32 %v656, 0.8
    %v697 = vadd.f32 %v696, 0.0
    %v698 = vadd.f32 %v697, %v138
    %v699 = vsub.f32 %v698, %v659
    %vm700 = vcmp.gt.f32.partialorder %v699, %v695
    %v701 = vsel %vm700, 1, 0
    %v702 = vcvt.s32.f32 %v701
    %v703 = vsel %vm700, 0.0, %v698
    %v704 = vmul.f32 %v659, 0.99
    %v705 = vmul.f32 %v702, 0.05
    %v706 = vadd.f32 %v704, %v705
    %707 = vmatpush.msra.mxu0 %v91
    %708 = vmatpush.msra.mxu0 %v90
    %709 = vmatpush.msra.mxu0 %v89
    %710 = vmatpush.msra.mxu0 %v88
    %711 = vmatpush.msra.mxu0 %v87
    %712 = vmatpush.msra.mxu0 %v86
    %713 = vmatpush.msra.mxu0 %v85
    %714 = vmatpush.msra.mxu0 %v84
    %715 = vmatpush.msra.mxu0 %v83
    %716 = vmatpush.msra.mxu0 %v82
    %717 = vmatpush.msra.mxu0 %v81
    %718 = vmatpush.msra.mxu0 %v80
    %719 = vmatpush.msra.mxu0 %v79
    %720 = vmatpush.msra.mxu0 %v78
    %721 = vmatpush.msra.mxu0 %v77
    %722 = vmatpush.msra.mxu0 %v76
    %723 = vmatmul.f32.gmra.mxu0 %v702
    %v724 = vpop.f32.mrf.mxu0
    %v725 = vadd.f32 %v98, %v724
    %726 = vdwg.mxu0
    %s727 = scalar_lea.vmem %s6, 96
    %v728 = vld [vmem:[%s727] sm:$0xff]
    %v729 = vmul.f32 %v689, 0.8
    %v730 = vadd.f32 %v729, 0.0
    %v731 = vadd.f32 %v730, %v725
    %v732 = vsub.f32 %v731, %v692
    %vm733 = vcmp.gt.f32.partialorder %v732, %v728
    %v734 = vsel %vm733, 1, 0
    %v735 = vcvt.s32.f32 %v734
    %v736 = vsel %vm733, 0.0, %v731
    %v737 = vmul.f32 %v692, 0.99
    %v738 = vmul.f32 %v735, 0.05
    %v739 = vadd.f32 %v737, %v738
    %v740 = vadd.f32 %v693, %v735
    %s741 = scalar_lea.vmem %s5, 104
    %v742 = vld [vmem:[%s741] sm:$0xff]
    %v743 = vmul.f32 %v703, 0.8
    %v744 = vadd.f32 %v743, 0.0
    %v745 = vadd.f32 %v744, %v138
    %v746 = vsub.f32 %v745, %v706
    %vm747 = vcmp.gt.f32.partialorder %v746, %v742
    %v748 = vsel %vm747, 1, 0
    %v749 = vcvt.s32.f32 %v748
    %v750 = vsel %vm747, 0.0, %v745
    %v751 = vmul.f32 %v706, 0.99
    %v752 = vmul.f32 %v749, 0.05
    %v753 = vadd.f32 %v751, %v752
    %754 = vmatpush.msra.mxu0 %v91
    %755 = vmatpush.msra.mxu0 %v90
    %756 = vmatpush.msra.mxu0 %v89
    %757 = vmatpush.msra.mxu0 %v88
    %758 = vmatpush.msra.mxu0 %v87
    %759 = vmatpush.msra.mxu0 %v86
    %760 = vmatpush.msra.mxu0 %v85
    %761 = vmatpush.msra.mxu0 %v84
    %762 = vmatpush.msra.mxu0 %v83
    %763 = vmatpush.msra.mxu0 %v82
    %764 = vmatpush.msra.mxu0 %v81
    %765 = vmatpush.msra.mxu0 %v80
    %766 = vmatpush.msra.mxu0 %v79
    %767 = vmatpush.msra.mxu0 %v78
    %768 = vmatpush.msra.mxu0 %v77
    %769 = vmatpush.msra.mxu0 %v76
    %770 = vmatmul.f32.gmra.mxu0 %v749
    %v771 = vpop.f32.mrf.mxu0
    %v772 = vadd.f32 %v98, %v771
    %773 = vdwg.mxu0
    %s774 = scalar_lea.vmem %s6, 104
    %v775 = vld [vmem:[%s774] sm:$0xff]
    %v776 = vmul.f32 %v736, 0.8
    %v777 = vadd.f32 %v776, 0.0
    %v778 = vadd.f32 %v777, %v772
    %v779 = vsub.f32 %v778, %v739
    %vm780 = vcmp.gt.f32.partialorder %v779, %v775
    %v781 = vsel %vm780, 1, 0
    %v782 = vcvt.s32.f32 %v781
    %v783 = vsel %vm780, 0.0, %v778
    %v784 = vmul.f32 %v739, 0.99
    %v785 = vmul.f32 %v782, 0.05
    %v786 = vadd.f32 %v784, %v785
    %v787 = vadd.f32 %v740, %v782
    %s788 = scalar_lea.vmem %s5, 112
    %v789 = vld [vmem:[%s788] sm:$0xff]
    %v790 = vmul.f32 %v750, 0.8
    %v791 = vadd.f32 %v790, 0.0
    %v792 = vadd.f32 %v791, %v138
    %v793 = vsub.f32 %v792, %v753
    %vm794 = vcmp.gt.f32.partialorder %v793, %v789
    %v795 = vsel %vm794, 1, 0
    %v796 = vcvt.s32.f32 %v795
    %v797 = vsel %vm794, 0.0, %v792
    %v798 = vmul.f32 %v753, 0.99
    %v799 = vmul.f32 %v796, 0.05
    %v800 = vadd.f32 %v798, %v799
    %801 = vmatpush.msra.mxu0 %v91
    %802 = vmatpush.msra.mxu0 %v90
    %803 = vmatpush.msra.mxu0 %v89
    %804 = vmatpush.msra.mxu0 %v88
    %805 = vmatpush.msra.mxu0 %v87
    %806 = vmatpush.msra.mxu0 %v86
    %807 = vmatpush.msra.mxu0 %v85
    %808 = vmatpush.msra.mxu0 %v84
    %809 = vmatpush.msra.mxu0 %v83
    %810 = vmatpush.msra.mxu0 %v82
    %811 = vmatpush.msra.mxu0 %v81
    %812 = vmatpush.msra.mxu0 %v80
    %813 = vmatpush.msra.mxu0 %v79
    %814 = vmatpush.msra.mxu0 %v78
    %815 = vmatpush.msra.mxu0 %v77
    %816 = vmatpush.msra.mxu0 %v76
    %817 = vmatmul.f32.gmra.mxu0 %v796
    %v818 = vpop.f32.mrf.mxu0
    %v819 = vadd.f32 %v98, %v818
    %820 = vdwg.mxu0
    %s821 = scalar_lea.vmem %s6, 112
    %v822 = vld [vmem:[%s821] sm:$0xff]
    %v823 = vmul.f32 %v783, 0.8
    %v824 = vadd.f32 %v823, 0.0
    %v825 = vadd.f32 %v824, %v819
    %v826 = vsub.f32 %v825, %v786
    %vm827 = vcmp.gt.f32.partialorder %v826, %v822
    %v828 = vsel %vm827, 1, 0
    %v829 = vcvt.s32.f32 %v828
    %v830 = vsel %vm827, 0.0, %v825
    %v831 = vmul.f32 %v786, 0.99
    %v832 = vmul.f32 %v829, 0.05
    %v833 = vadd.f32 %v831, %v832
    %v834 = vadd.f32 %v787, %v829
    %s835 = scalar_lea.vmem %s5, 120
    %v836 = vld [vmem:[%s835] sm:$0xff]
    %v837 = vmul.f32 %v797, 0.8
    %v838 = vadd.f32 %v837, 0.0
    %v839 = vadd.f32 %v838, %v138
    %v840 = vsub.f32 %v839, %v800
    %vm841 = vcmp.gt.f32.partialorder %v840, %v836
    %v842 = vsel %vm841, 1, 0
    %v843 = vcvt.s32.f32 %v842
    %844 = vmatpush.msra.mxu0 %v91
    %845 = vmatpush.msra.mxu0 %v90
    %846 = vmatpush.msra.mxu0 %v89
    %847 = vmatpush.msra.mxu0 %v88
    %848 = vmatpush.msra.mxu0 %v87
    %849 = vmatpush.msra.mxu0 %v86
    %850 = vmatpush.msra.mxu0 %v85
    %851 = vmatpush.msra.mxu0 %v84
    %852 = vmatpush.msra.mxu0 %v83
    %853 = vmatpush.msra.mxu0 %v82
    %854 = vmatpush.msra.mxu0 %v81
    %855 = vmatpush.msra.mxu0 %v80
    %856 = vmatpush.msra.mxu0 %v79
    %857 = vmatpush.msra.mxu0 %v78
    %858 = vmatpush.msra.mxu0 %v77
    %859 = vmatpush.msra.mxu0 %v76
    %860 = vmatmul.f32.gmra.mxu0 %v843
    %v861 = vpop.f32.mrf.mxu0
    %v862 = vadd.f32 %v98, %v861
    %863 = vdwg.mxu0
    %s864 = scalar_lea.vmem %s6, 120
    %v865 = vld [vmem:[%s864] sm:$0xff]
    %v866 = vmul.f32 %v830, 0.8
    %v867 = vadd.f32 %v866, 0.0
    %v868 = vadd.f32 %v867, %v862
    %v869 = vsub.f32 %v868, %v833
    %vm870 = vcmp.gt.f32.partialorder %v869, %v865
    %v871 = vsel %vm870, 1, 0
    %v872 = vcvt.s32.f32 %v871
    %v873 = vadd.f32 %v834, %v872
    %v874 = vmul.f32 %v873, 0.0625
    %875 = vst [vmem:[%s7] sm:$0xff] %v874
    // Predicated region
    $region34: #{adaptive_stochastic_snn.3} parent=1 // pred_check
      _
    $region35: #{adaptive_stochastic_snn.3} parent=1 // pred_check_branch
      %877 = sbr.rel (0) target = $region37
    $region36: #{adaptive_stochastic_snn.3} parent=1 // pred_region
      _
    $region37: #{adaptive_stochastic_snn.3} parent=1 // pred_fallthru
      _
    // Predicated region
    $region38: #{adaptive_stochastic_snn.3} parent=1 // pred_check
      _
    $region39: #{adaptive_stochastic_snn.3} parent=1 // pred_check_branch
      %879 = sbr.rel (0) target = $region41
    $region40: #{adaptive_stochastic_snn.3} parent=1 // pred_region
      _
    $region41: #{adaptive_stochastic_snn.3} parent=1 // pred_fallthru
      _
    %880 = vsyncpa [#allocation3], 1

</llo_original>
